<compile_context>
chip_gen: v7x
topology: tpu7x:2x2x1
jax: 0.10.0
libtpu: 0.0.40
codegen_flags: <defaults>
</compile_context>

<pallas_src>
import functools

import numpy as np

import jax
import jax.numpy as jnp
from jax.experimental import pallas as pl
from jax.experimental.pallas import tpu as pltpu


# ---------------------------------------------------------------------------
# Bilinear interpolation matrix matching F.interpolate(align_corners=False).
# Cached as numpy (not device arrays) so multi-device / jit use stays clean.
# ---------------------------------------------------------------------------
@functools.lru_cache(maxsize=None)
def _bilinear_matrix(n, scale):
    """(n*scale, n) numpy matrix reproducing F.interpolate(bilinear, align_corners=False)."""
    m = n * scale
    src = (np.arange(m, dtype=np.float64) + 0.5) / scale - 0.5
    lo = np.floor(src)
    frac = (src - lo).astype(np.float32)
    lo_i = np.clip(lo, 0, n - 1).astype(np.int64)
    hi_i = np.clip(lo + 1, 0, n - 1).astype(np.int64)
    mat = np.zeros((m, n), dtype=np.float32)
    mat[np.arange(m), lo_i] += 1.0 - frac
    mat[np.arange(m), hi_i] += frac
    return mat


# ---------------------------------------------------------------------------
# Kernel A: head 1x1 conv + x4 bilinear upsample (un-fused, per-batch grid).
# ---------------------------------------------------------------------------
def _head_up4_kernel(w_s, b_s, x_ref, uh_ref, uwt_ref, o_ref):
    # w_s:   SMEM (K, C) f32        b_s:  SMEM (K,) f32
    # x_ref: VMEM (1, C, H, W) bf16
    # uh_ref: (4H, H) bf16          uwt_ref: (W, 4W) bf16
    # o_ref: (1, K*4H, 4W) f32
    K, C = w_s.shape
    four_h = uh_ref.shape[0]
    for k in range(K):                      # static unroll; K (= num_classes) is tiny
        # 1x1 conv = weighted channel sum on the VPU (no reshape, no folded G).
        head = w_s[k, 0] * x_ref[0, 0]      # f32 * bf16 -> f32, shape (H, W)
        for c in range(1, C):
            head = head + w_s[k, c] * x_ref[0, c]
        # Bilinear x4 upsample as two small MXU matmuls (bf16 in, f32 accumulate).
        t = jnp.dot(uh_ref[...], head.astype(jnp.bfloat16),
                    preferred_element_type=jnp.float32)          # (4H, W)
        y = jnp.dot(t.astype(jnp.bfloat16), uwt_ref[...],
                    preferred_element_type=jnp.float32)          # (4H, 4W)
        # Direct slice store (lane-dense once 4W is a multiple of 128) + scalar bias.
        o_ref[0, pl.ds(k * four_h, four_h), :] = y + b_s[k]


def head_upsample4(x_nchw, w_kc, b_k):
    """nn.Conv2d(C, K, 1) followed by F.interpolate(scale_factor=4, bilinear,
    align_corners=False), fused into one pallas_call with a batch grid."""
    B, C, H, W = x_nchw.shape
    K = w_kc.shape[0]
    uh = jnp.asarray(_bilinear_matrix(H, 4), dtype=jnp.bfloat16)       # (4H, H)
    uwt = jnp.asarray(_bilinear_matrix(W, 4).T, dtype=jnp.bfloat16)    # (W, 4W)
    # bf16 activations halve HBM traffic / VMEM footprint; in a real pipeline the
    # decoder would already emit bf16 and this cast is a no-op.
    x = x_nchw.astype(jnp.bfloat16)
    w = w_kc.astype(jnp.float32)            # (K, C) scalars -> SMEM
    bias = b_k.astype(jnp.float32)          # (K,)   scalars -> SMEM

    flops = B * K * (2 * C * H * W + 2 * 4 * H * H * W + 2 * 4 * H * W * 4 * W)
    bytes_accessed = (2 * B * C * H * W + 2 * (4 * H * H + W * 4 * W)
                      + 4 * (K * C + K) + 4 * B * K * 4 * H * 4 * W)

    out = pl.pallas_call(
        _head_up4_kernel,
        out_shape=jax.ShapeDtypeStruct((B, K * 4 * H, 4 * W), jnp.float32),
        grid=(B,),
        in_specs=[
            pl.BlockSpec(memory_space=pltpu.MemorySpace.SMEM),          # w  (K, C)
            pl.BlockSpec(memory_space=pltpu.MemorySpace.SMEM),          # bias (K,)
            pl.BlockSpec((1, C, H, W), lambda b: (b, 0, 0, 0)),         # x per-batch
            pl.BlockSpec((4 * H, H), lambda b: (0, 0)),                 # Uh (shared)
            pl.BlockSpec((W, 4 * W), lambda b: (0, 0)),                 # UwT (shared)
        ],
        out_specs=pl.BlockSpec((1, K * 4 * H, 4 * W), lambda b: (b, 0, 0)),
        compiler_params=pltpu.CompilerParams(
            dimension_semantics=("parallel",),        # batches split across v7x cores
            vmem_limit_bytes=64 * 1024 * 1024),
        cost_estimate=pl.CostEstimate(
            flops=flops, transcendentals=0, bytes_accessed=bytes_accessed),
    )(w, bias, x, uh, uwt)

    return out.reshape(B, K, 4 * H, 4 * W)   # free reshape, no transpose needed


# ---------------------------------------------------------------------------
# Kernel B: aux 1x1-conv head (Cout=1) — one pallas_call per level, exact shapes.
# ---------------------------------------------------------------------------
def _aux_head_kernel(b_s, x_ref, w_ref, o_ref):
    # b_s: SMEM (1,) f32   x_ref: (B, C, S) bf16   w_ref: (1, C) bf16   o_ref: (B, S) f32
    B = x_ref.shape[0]
    for b in range(B):                       # static unroll; B is tiny
        y = jnp.dot(w_ref[...], x_ref[b], preferred_element_type=jnp.float32)  # (1, S)
        o_ref[pl.ds(b, 1), :] = y + b_s[0]   # direct row store, no concatenate


def aux_head(feature, w, b):
    """nn.Conv2d(C_i, 1, kernel_size=1) on one encoder level (exact-shape blocks)."""
    B, C, Hf, Wf = feature.shape
    S = Hf * Wf
    xf = feature.reshape(B, C, S).astype(jnp.bfloat16)   # contiguous reshape only
    wq = w.reshape(1, C).astype(jnp.bfloat16)
    bq = b.reshape(1).astype(jnp.float32)

    out = pl.pallas_call(
        _aux_head_kernel,
        out_shape=jax.ShapeDtypeStruct((B, S), jnp.float32),
        grid=(1,),
        in_specs=[
            pl.BlockSpec(memory_space=pltpu.MemorySpace.SMEM),   # bias scalar
            pl.BlockSpec((B, C, S), lambda i: (0, 0, 0)),
            pl.BlockSpec((1, C), lambda i: (0, 0)),
        ],
        out_specs=pl.BlockSpec((B, S), lambda i: (0, 0)),
        compiler_params=pltpu.CompilerParams(dimension_semantics=("arbitrary",)),
        cost_estimate=pl.CostEstimate(
            flops=2 * B * C * S, transcendentals=0,
            bytes_accessed=2 * (B * C * S + C) + 4 * (1 + B * S)),
    )(bq, xf, wq)

    return out.reshape(B, 1, Hf, Wf)


def aux_heads(features, weights, biases):
    """All aux heads; exact per-level blocks (no (Cmax, Smax) padding, no pad/stack)."""
    return [aux_head(f, w, b) for f, w, b in zip(features, weights, biases)]


# ---------------------------------------------------------------------------
# Net.forward (segformer-style decoder branch, aux=True)
# ---------------------------------------------------------------------------
def net_forward(decoder_last, encoder_feats, params):
    # self.dropout: identity at inference time.
    logit = head_upsample4(decoder_last, params["head_w"], params["head_b"])
    aux_logits = aux_heads(
        encoder_feats,
        [w for w, _ in params["aux"]],
        [b for _, b in params["aux"]],
    )
    return logit, aux_logits  # forward() returns logit; aux logits also computed


if __name__ == "__main__":
    B, Cin, H, W = 2, 3, 64, 64
    encoder_dim = [64, 128, 320, 512]   # pvt_v2_b4 embed_dims (strides 4/8/16/32)
    decoder_dim = 64                    # CFG['decoder_dim']
    num_classes = 1                     # CFG['num_classes']

    key = jax.random.PRNGKey(0)
    keys = jax.random.split(key, 16)

    x = jax.random.normal(keys[0], (B, Cin, H, W), jnp.float32)  # NCHW input image

    # TODO(synk): external encoder/decoder modules — synthesize their outputs.
    encoder_feats = [
        jax.random.normal(
            keys[1 + i],
            (B, encoder_dim[i], H // (4 * 2 ** i), W // (4 * 2 ** i)),
            jnp.float32,
        )
        for i in range(4)
    ]
    decoder_last = jax.random.normal(
        keys[5], (B, decoder_dim, H // 4, W // 4), jnp.float32
    )

    # Deterministic synthetic parameters in PyTorch Conv2d (Cout, Cin) layout.
    params = {
        "head_w": 0.02 * jax.random.normal(keys[6], (num_classes, decoder_dim), jnp.float32),
        "head_b": 0.1 * jax.random.normal(keys[15], (num_classes,), jnp.float32),
        "aux": [
            (
                0.02 * jax.random.normal(keys[7 + i], (1, encoder_dim[i]), jnp.float32),
                0.1 * jax.random.normal(keys[11 + i], (1,), jnp.float32),
            )
            for i in range(4)
        ],
    }

    logit, aux_logits = net_forward(decoder_last, encoder_feats, params)
    jax.block_until_ready(logit)
    for a in aux_logits:
        jax.block_until_ready(a)

    # Correctness checks against plain-JAX f32 references (kernels use bf16 operands,
    # f32 accumulation -> slightly looser tolerance).
    ref_head = (
        jnp.einsum("kc,bchw->bkhw", params["head_w"], decoder_last)
        + params["head_b"][None, :, None, None]
    )
    Uh_f = jnp.asarray(_bilinear_matrix(H // 4, 4))
    Uw_f = jnp.asarray(_bilinear_matrix(W // 4, 4))
    ref_logit = jnp.einsum("ph,bkhw,qw->bkpq", Uh_f, ref_head, Uw_f)
    assert logit.shape == (B, num_classes, H, W)
    assert jnp.allclose(logit, ref_logit, atol=2e-2, rtol=2e-2)
    for i in range(4):
        w_i, b_i = params["aux"][i]
        ref_aux = (
            jnp.einsum("kc,bchw->bkhw", w_i, encoder_feats[i])
            + b_i[None, :, None, None]
        )
        assert aux_logits[i].shape == ref_aux.shape
        assert jnp.allclose(aux_logits[i], ref_aux, atol=2e-2, rtol=2e-2)

    print("KERNEL_OK")
</pallas_src>

<mosaic_0001>
module attributes {stable_mosaic.version = 11 : i64} {
  func.func @_head_up4_kernel(%arg0: i32, %arg1: memref<1x64xf32, #tpu.memory_space<smem>>, %arg2: memref<1xf32, #tpu.memory_space<smem>>, %arg3: memref<1x64x16x16xbf16, #tpu.memory_space<vmem>>, %arg4: memref<64x16xbf16, #tpu.memory_space<vmem>>, %arg5: memref<16x64xbf16, #tpu.memory_space<vmem>>, %arg6: memref<1x64x64xf32, #tpu.memory_space<vmem>>) attributes {dimension_semantics = [#tpu.dimension_semantics<parallel>], iteration_bounds = array<i64: 2>, scalar_prefetch = 0 : i64, scratch_operands = 0 : i64, tpu.core_type = #tpu.core_type<tc>, window_params = [{transform_indices = @transform_0, window_bounds = array<i64: 1, 64>}, {transform_indices = @transform_1, window_bounds = array<i64: 1>}, {transform_indices = @transform_2, window_bounds = array<i64: 1, 64, 16, 16>}, {pipeline_mode = #tpu.pipeline_mode<synchronous>, transform_indices = @transform_3, window_bounds = array<i64: 64, 16>}, {pipeline_mode = #tpu.pipeline_mode<synchronous>, transform_indices = @transform_4, window_bounds = array<i64: 16, 64>}, {transform_indices = @transform_5, window_bounds = array<i64: 1, 64, 64>}]} {
    %c0 = arith.constant 0 : index
    %c0_0 = arith.constant 0 : index
    %0 = memref.load %arg1[%c0, %c0_0] : memref<1x64xf32, #tpu.memory_space<smem>>
    %c0_1 = arith.constant 0 : index
    %c0_2 = arith.constant 0 : index
    %c0_3 = arith.constant 0 : index
    %c0_4 = arith.constant 0 : index
    %1 = vector.load %arg3[%c0_1, %c0_2, %c0_3, %c0_4] : memref<1x64x16x16xbf16, #tpu.memory_space<vmem>>, vector<1x1x16x16xbf16>
    %2 = vector.shape_cast %1 : vector<1x1x16x16xbf16> to vector<16x16xbf16>
    %3 = arith.extf %2 : vector<16x16xbf16> to vector<16x16xf32>
    %4 = vector.broadcast %0 : f32 to vector<16x16xf32>
    %5 = arith.mulf %4, %3 : vector<16x16xf32>
    %c0_5 = arith.constant 0 : index
    %c1 = arith.constant 1 : index
    %6 = memref.load %arg1[%c0_5, %c1] : memref<1x64xf32, #tpu.memory_space<smem>>
    %c0_6 = arith.constant 0 : index
    %c1_7 = arith.constant 1 : index
    %c0_8 = arith.constant 0 : index
    %c0_9 = arith.constant 0 : index
    %7 = vector.load %arg3[%c0_6, %c1_7, %c0_8, %c0_9] : memref<1x64x16x16xbf16, #tpu.memory_space<vmem>>, vector<1x1x16x16xbf16>
    %8 = vector.shape_cast %7 : vector<1x1x16x16xbf16> to vector<16x16xbf16>
    %9 = arith.extf %8 : vector<16x16xbf16> to vector<16x16xf32>
    %10 = vector.broadcast %6 : f32 to vector<16x16xf32>
    %11 = arith.mulf %10, %9 : vector<16x16xf32>
    %12 = arith.addf %5, %11 : vector<16x16xf32>
    %c0_10 = arith.constant 0 : index
    %c2 = arith.constant 2 : index
    %13 = memref.load %arg1[%c0_10, %c2] : memref<1x64xf32, #tpu.memory_space<smem>>
    %c0_11 = arith.constant 0 : index
    %c2_12 = arith.constant 2 : index
    %c0_13 = arith.constant 0 : index
    %c0_14 = arith.constant 0 : index
    %14 = vector.load %arg3[%c0_11, %c2_12, %c0_13, %c0_14] : memref<1x64x16x16xbf16, #tpu.memory_space<vmem>>, vector<1x1x16x16xbf16>
    %15 = vector.shape_cast %14 : vector<1x1x16x16xbf16> to vector<16x16xbf16>
    %16 = arith.extf %15 : vector<16x16xbf16> to vector<16x16xf32>
    %17 = vector.broadcast %13 : f32 to vector<16x16xf32>
    %18 = arith.mulf %17, %16 : vector<16x16xf32>
    %19 = arith.addf %12, %18 : vector<16x16xf32>
    %c0_15 = arith.constant 0 : index
    %c3 = arith.constant 3 : index
    %20 = memref.load %arg1[%c0_15, %c3] : memref<1x64xf32, #tpu.memory_space<smem>>
    %c0_16 = arith.constant 0 : index
    %c3_17 = arith.constant 3 : index
    %c0_18 = arith.constant 0 : index
    %c0_19 = arith.constant 0 : index
    %21 = vector.load %arg3[%c0_16, %c3_17, %c0_18, %c0_19] : memref<1x64x16x16xbf16, #tpu.memory_space<vmem>>, vector<1x1x16x16xbf16>
    %22 = vector.shape_cast %21 : vector<1x1x16x16xbf16> to vector<16x16xbf16>
    %23 = arith.extf %22 : vector<16x16xbf16> to vector<16x16xf32>
    %24 = vector.broadcast %20 : f32 to vector<16x16xf32>
    %25 = arith.mulf %24, %23 : vector<16x16xf32>
    %26 = arith.addf %19, %25 : vector<16x16xf32>
    %c0_20 = arith.constant 0 : index
    %c4 = arith.constant 4 : index
    %27 = memref.load %arg1[%c0_20, %c4] : memref<1x64xf32, #tpu.memory_space<smem>>
    %c0_21 = arith.constant 0 : index
    %c4_22 = arith.constant 4 : index
    %c0_23 = arith.constant 0 : index
    %c0_24 = arith.constant 0 : index
    %28 = vector.load %arg3[%c0_21, %c4_22, %c0_23, %c0_24] : memref<1x64x16x16xbf16, #tpu.memory_space<vmem>>, vector<1x1x16x16xbf16>
    %29 = vector.shape_cast %28 : vector<1x1x16x16xbf16> to vector<16x16xbf16>
    %30 = arith.extf %29 : vector<16x16xbf16> to vector<16x16xf32>
    %31 = vector.broadcast %27 : f32 to vector<16x16xf32>
    %32 = arith.mulf %31, %30 : vector<16x16xf32>
    %33 = arith.addf %26, %32 : vector<16x16xf32>
    %c0_25 = arith.constant 0 : index
    %c5 = arith.constant 5 : index
    %34 = memref.load %arg1[%c0_25, %c5] : memref<1x64xf32, #tpu.memory_space<smem>>
    %c0_26 = arith.constant 0 : index
    %c5_27 = arith.constant 5 : index
    %c0_28 = arith.constant 0 : index
    %c0_29 = arith.constant 0 : index
    %35 = vector.load %arg3[%c0_26, %c5_27, %c0_28, %c0_29] : memref<1x64x16x16xbf16, #tpu.memory_space<vmem>>, vector<1x1x16x16xbf16>
    %36 = vector.shape_cast %35 : vector<1x1x16x16xbf16> to vector<16x16xbf16>
    %37 = arith.extf %36 : vector<16x16xbf16> to vector<16x16xf32>
    %38 = vector.broadcast %34 : f32 to vector<16x16xf32>
    %39 = arith.mulf %38, %37 : vector<16x16xf32>
    %40 = arith.addf %33, %39 : vector<16x16xf32>
    %c0_30 = arith.constant 0 : index
    %c6 = arith.constant 6 : index
    %41 = memref.load %arg1[%c0_30, %c6] : memref<1x64xf32, #tpu.memory_space<smem>>
    %c0_31 = arith.constant 0 : index
    %c6_32 = arith.constant 6 : index
    %c0_33 = arith.constant 0 : index
    %c0_34 = arith.constant 0 : index
    %42 = vector.load %arg3[%c0_31, %c6_32, %c0_33, %c0_34] : memref<1x64x16x16xbf16, #tpu.memory_space<vmem>>, vector<1x1x16x16xbf16>
    %43 = vector.shape_cast %42 : vector<1x1x16x16xbf16> to vector<16x16xbf16>
    %44 = arith.extf %43 : vector<16x16xbf16> to vector<16x16xf32>
    %45 = vector.broadcast %41 : f32 to vector<16x16xf32>
    %46 = arith.mulf %45, %44 : vector<16x16xf32>
    %47 = arith.addf %40, %46 : vector<16x16xf32>
    %c0_35 = arith.constant 0 : index
    %c7 = arith.constant 7 : index
    %48 = memref.load %arg1[%c0_35, %c7] : memref<1x64xf32, #tpu.memory_space<smem>>
    %c0_36 = arith.constant 0 : index
    %c7_37 = arith.constant 7 : index
    %c0_38 = arith.constant 0 : index
    %c0_39 = arith.constant 0 : index
    %49 = vector.load %arg3[%c0_36, %c7_37, %c0_38, %c0_39] : memref<1x64x16x16xbf16, #tpu.memory_space<vmem>>, vector<1x1x16x16xbf16>
    %50 = vector.shape_cast %49 : vector<1x1x16x16xbf16> to vector<16x16xbf16>
    %51 = arith.extf %50 : vector<16x16xbf16> to vector<16x16xf32>
    %52 = vector.broadcast %48 : f32 to vector<16x16xf32>
    %53 = arith.mulf %52, %51 : vector<16x16xf32>
    %54 = arith.addf %47, %53 : vector<16x16xf32>
    %c0_40 = arith.constant 0 : index
    %c8 = arith.constant 8 : index
    %55 = memref.load %arg1[%c0_40, %c8] : memref<1x64xf32, #tpu.memory_space<smem>>
    %c0_41 = arith.constant 0 : index
    %c8_42 = arith.constant 8 : index
    %c0_43 = arith.constant 0 : index
    %c0_44 = arith.constant 0 : index
    %56 = vector.load %arg3[%c0_41, %c8_42, %c0_43, %c0_44] : memref<1x64x16x16xbf16, #tpu.memory_space<vmem>>, vector<1x1x16x16xbf16>
    %57 = vector.shape_cast %56 : vector<1x1x16x16xbf16> to vector<16x16xbf16>
    %58 = arith.extf %57 : vector<16x16xbf16> to vector<16x16xf32>
    %59 = vector.broadcast %55 : f32 to vector<16x16xf32>
    %60 = arith.mulf %59, %58 : vector<16x16xf32>
    %61 = arith.addf %54, %60 : vector<16x16xf32>
    %c0_45 = arith.constant 0 : index
    %c9 = arith.constant 9 : index
    %62 = memref.load %arg1[%c0_45, %c9] : memref<1x64xf32, #tpu.memory_space<smem>>
    %c0_46 = arith.constant 0 : index
    %c9_47 = arith.constant 9 : index
    %c0_48 = arith.constant 0 : index
    %c0_49 = arith.constant 0 : index
    %63 = vector.load %arg3[%c0_46, %c9_47, %c0_48, %c0_49] : memref<1x64x16x16xbf16, #tpu.memory_space<vmem>>, vector<1x1x16x16xbf16>
    %64 = vector.shape_cast %63 : vector<1x1x16x16xbf16> to vector<16x16xbf16>
    %65 = arith.extf %64 : vector<16x16xbf16> to vector<16x16xf32>
    %66 = vector.broadcast %62 : f32 to vector<16x16xf32>
    %67 = arith.mulf %66, %65 : vector<16x16xf32>
    %68 = arith.addf %61, %67 : vector<16x16xf32>
    %c0_50 = arith.constant 0 : index
    %c10 = arith.constant 10 : index
    %69 = memref.load %arg1[%c0_50, %c10] : memref<1x64xf32, #tpu.memory_space<smem>>
    %c0_51 = arith.constant 0 : index
    %c10_52 = arith.constant 10 : index
    %c0_53 = arith.constant 0 : index
    %c0_54 = arith.constant 0 : index
    %70 = vector.load %arg3[%c0_51, %c10_52, %c0_53, %c0_54] : memref<1x64x16x16xbf16, #tpu.memory_space<vmem>>, vector<1x1x16x16xbf16>
    %71 = vector.shape_cast %70 : vector<1x1x16x16xbf16> to vector<16x16xbf16>
    %72 = arith.extf %71 : vector<16x16xbf16> to vector<16x16xf32>
    %73 = vector.broadcast %69 : f32 to vector<16x16xf32>
    %74 = arith.mulf %73, %72 : vector<16x16xf32>
    %75 = arith.addf %68, %74 : vector<16x16xf32>
    %c0_55 = arith.constant 0 : index
    %c11 = arith.constant 11 : index
    %76 = memref.load %arg1[%c0_55, %c11] : memref<1x64xf32, #tpu.memory_space<smem>>
    %c0_56 = arith.constant 0 : index
    %c11_57 = arith.constant 11 : index
    %c0_58 = arith.constant 0 : index
    %c0_59 = arith.constant 0 : index
    %77 = vector.load %arg3[%c0_56, %c11_57, %c0_58, %c0_59] : memref<1x64x16x16xbf16, #tpu.memory_space<vmem>>, vector<1x1x16x16xbf16>
    %78 = vector.shape_cast %77 : vector<1x1x16x16xbf16> to vector<16x16xbf16>
    %79 = arith.extf %78 : vector<16x16xbf16> to vector<16x16xf32>
    %80 = vector.broadcast %76 : f32 to vector<16x16xf32>
    %81 = arith.mulf %80, %79 : vector<16x16xf32>
    %82 = arith.addf %75, %81 : vector<16x16xf32>
    %c0_60 = arith.constant 0 : index
    %c12 = arith.constant 12 : index
    %83 = memref.load %arg1[%c0_60, %c12] : memref<1x64xf32, #tpu.memory_space<smem>>
    %c0_61 = arith.constant 0 : index
    %c12_62 = arith.constant 12 : index
    %c0_63 = arith.constant 0 : index
    %c0_64 = arith.constant 0 : index
    %84 = vector.load %arg3[%c0_61, %c12_62, %c0_63, %c0_64] : memref<1x64x16x16xbf16, #tpu.memory_space<vmem>>, vector<1x1x16x16xbf16>
    %85 = vector.shape_cast %84 : vector<1x1x16x16xbf16> to vector<16x16xbf16>
    %86 = arith.extf %85 : vector<16x16xbf16> to vector<16x16xf32>
    %87 = vector.broadcast %83 : f32 to vector<16x16xf32>
    %88 = arith.mulf %87, %86 : vector<16x16xf32>
    %89 = arith.addf %82, %88 : vector<16x16xf32>
    %c0_65 = arith.constant 0 : index
    %c13 = arith.constant 13 : index
    %90 = memref.load %arg1[%c0_65, %c13] : memref<1x64xf32, #tpu.memory_space<smem>>
    %c0_66 = arith.constant 0 : index
    %c13_67 = arith.constant 13 : index
    %c0_68 = arith.constant 0 : index
    %c0_69 = arith.constant 0 : index
    %91 = vector.load %arg3[%c0_66, %c13_67, %c0_68, %c0_69] : memref<1x64x16x16xbf16, #tpu.memory_space<vmem>>, vector<1x1x16x16xbf16>
    %92 = vector.shape_cast %91 : vector<1x1x16x16xbf16> to vector<16x16xbf16>
    %93 = arith.extf %92 : vector<16x16xbf16> to vector<16x16xf32>
    %94 = vector.broadcast %90 : f32 to vector<16x16xf32>
    %95 = arith.mulf %94, %93 : vector<16x16xf32>
    %96 = arith.addf %89, %95 : vector<16x16xf32>
    %c0_70 = arith.constant 0 : index
    %c14 = arith.constant 14 : index
    %97 = memref.load %arg1[%c0_70, %c14] : memref<1x64xf32, #tpu.memory_space<smem>>
    %c0_71 = arith.constant 0 : index
    %c14_72 = arith.constant 14 : index
    %c0_73 = arith.constant 0 : index
    %c0_74 = arith.constant 0 : index
    %98 = vector.load %arg3[%c0_71, %c14_72, %c0_73, %c0_74] : memref<1x64x16x16xbf16, #tpu.memory_space<vmem>>, vector<1x1x16x16xbf16>
    %99 = vector.shape_cast %98 : vector<1x1x16x16xbf16> to vector<16x16xbf16>
    %100 = arith.extf %99 : vector<16x16xbf16> to vector<16x16xf32>
    %101 = vector.broadcast %97 : f32 to vector<16x16xf32>
    %102 = arith.mulf %101, %100 : vector<16x16xf32>
    %103 = arith.addf %96, %102 : vector<16x16xf32>
    %c0_75 = arith.constant 0 : index
    %c15 = arith.constant 15 : index
    %104 = memref.load %arg1[%c0_75, %c15] : memref<1x64xf32, #tpu.memory_space<smem>>
    %c0_76 = arith.constant 0 : index
    %c15_77 = arith.constant 15 : index
    %c0_78 = arith.constant 0 : index
    %c0_79 = arith.constant 0 : index
    %105 = vector.load %arg3[%c0_76, %c15_77, %c0_78, %c0_79] : memref<1x64x16x16xbf16, #tpu.memory_space<vmem>>, vector<1x1x16x16xbf16>
    %106 = vector.shape_cast %105 : vector<1x1x16x16xbf16> to vector<16x16xbf16>
    %107 = arith.extf %106 : vector<16x16xbf16> to vector<16x16xf32>
    %108 = vector.broadcast %104 : f32 to vector<16x16xf32>
    %109 = arith.mulf %108, %107 : vector<16x16xf32>
    %110 = arith.addf %103, %109 : vector<16x16xf32>
    %c0_80 = arith.constant 0 : index
    %c16 = arith.constant 16 : index
    %111 = memref.load %arg1[%c0_80, %c16] : memref<1x64xf32, #tpu.memory_space<smem>>
    %c0_81 = arith.constant 0 : index
    %c16_82 = arith.constant 16 : index
    %c0_83 = arith.constant 0 : index
    %c0_84 = arith.constant 0 : index
    %112 = vector.load %arg3[%c0_81, %c16_82, %c0_83, %c0_84] : memref<1x64x16x16xbf16, #tpu.memory_space<vmem>>, vector<1x1x16x16xbf16>
    %113 = vector.shape_cast %112 : vector<1x1x16x16xbf16> to vector<16x16xbf16>
    %114 = arith.extf %113 : vector<16x16xbf16> to vector<16x16xf32>
    %115 = vector.broadcast %111 : f32 to vector<16x16xf32>
    %116 = arith.mulf %115, %114 : vector<16x16xf32>
    %117 = arith.addf %110, %116 : vector<16x16xf32>
    %c0_85 = arith.constant 0 : index
    %c17 = arith.constant 17 : index
    %118 = memref.load %arg1[%c0_85, %c17] : memref<1x64xf32, #tpu.memory_space<smem>>
    %c0_86 = arith.constant 0 : index
    %c17_87 = arith.constant 17 : index
    %c0_88 = arith.constant 0 : index
    %c0_89 = arith.constant 0 : index
    %119 = vector.load %arg3[%c0_86, %c17_87, %c0_88, %c0_89] : memref<1x64x16x16xbf16, #tpu.memory_space<vmem>>, vector<1x1x16x16xbf16>
    %120 = vector.shape_cast %119 : vector<1x1x16x16xbf16> to vector<16x16xbf16>
    %121 = arith.extf %120 : vector<16x16xbf16> to vector<16x16xf32>
    %122 = vector.broadcast %118 : f32 to vector<16x16xf32>
    %123 = arith.mulf %122, %121 : vector<16x16xf32>
    %124 = arith.addf %117, %123 : vector<16x16xf32>
    %c0_90 = arith.constant 0 : index
    %c18 = arith.constant 18 : index
    %125 = memref.load %arg1[%c0_90, %c18] : memref<1x64xf32, #tpu.memory_space<smem>>
    %c0_91 = arith.constant 0 : index
    %c18_92 = arith.constant 18 : index
    %c0_93 = arith.constant 0 : index
    %c0_94 = arith.constant 0 : index
    %126 = vector.load %arg3[%c0_91, %c18_92, %c0_93, %c0_94] : memref<1x64x16x16xbf16, #tpu.memory_space<vmem>>, vector<1x1x16x16xbf16>
    %127 = vector.shape_cast %126 : vector<1x1x16x16xbf16> to vector<16x16xbf16>
    %128 = arith.extf %127 : vector<16x16xbf16> to vector<16x16xf32>
    %129 = vector.broadcast %125 : f32 to vector<16x16xf32>
    %130 = arith.mulf %129, %128 : vector<16x16xf32>
    %131 = arith.addf %124, %130 : vector<16x16xf32>
    %c0_95 = arith.constant 0 : index
    %c19 = arith.constant 19 : index
    %132 = memref.load %arg1[%c0_95, %c19] : memref<1x64xf32, #tpu.memory_space<smem>>
    %c0_96 = arith.constant 0 : index
    %c19_97 = arith.constant 19 : index
    %c0_98 = arith.constant 0 : index
    %c0_99 = arith.constant 0 : index
    %133 = vector.load %arg3[%c0_96, %c19_97, %c0_98, %c0_99] : memref<1x64x16x16xbf16, #tpu.memory_space<vmem>>, vector<1x1x16x16xbf16>
    %134 = vector.shape_cast %133 : vector<1x1x16x16xbf16> to vector<16x16xbf16>
    %135 = arith.extf %134 : vector<16x16xbf16> to vector<16x16xf32>
    %136 = vector.broadcast %132 : f32 to vector<16x16xf32>
    %137 = arith.mulf %136, %135 : vector<16x16xf32>
    %138 = arith.addf %131, %137 : vector<16x16xf32>
    %c0_100 = arith.constant 0 : index
    %c20 = arith.constant 20 : index
    %139 = memref.load %arg1[%c0_100, %c20] : memref<1x64xf32, #tpu.memory_space<smem>>
    %c0_101 = arith.constant 0 : index
    %c20_102 = arith.constant 20 : index
    %c0_103 = arith.constant 0 : index
    %c0_104 = arith.constant 0 : index
    %140 = vector.load %arg3[%c0_101, %c20_102, %c0_103, %c0_104] : memref<1x64x16x16xbf16, #tpu.memory_space<vmem>>, vector<1x1x16x16xbf16>
    %141 = vector.shape_cast %140 : vector<1x1x16x16xbf16> to vector<16x16xbf16>
    %142 = arith.extf %141 : vector<16x16xbf16> to vector<16x16xf32>
    %143 = vector.broadcast %139 : f32 to vector<16x16xf32>
    %144 = arith.mulf %143, %142 : vector<16x16xf32>
    %145 = arith.addf %138, %144 : vector<16x16xf32>
    %c0_105 = arith.constant 0 : index
    %c21 = arith.constant 21 : index
    %146 = memref.load %arg1[%c0_105, %c21] : memref<1x64xf32, #tpu.memory_space<smem>>
    %c0_106 = arith.constant 0 : index
    %c21_107 = arith.constant 21 : index
    %c0_108 = arith.constant 0 : index
    %c0_109 = arith.constant 0 : index
    %147 = vector.load %arg3[%c0_106, %c21_107, %c0_108, %c0_109] : memref<1x64x16x16xbf16, #tpu.memory_space<vmem>>, vector<1x1x16x16xbf16>
    %148 = vector.shape_cast %147 : vector<1x1x16x16xbf16> to vector<16x16xbf16>
    %149 = arith.extf %148 : vector<16x16xbf16> to vector<16x16xf32>
    %150 = vector.broadcast %146 : f32 to vector<16x16xf32>
    %151 = arith.mulf %150, %149 : vector<16x16xf32>
    %152 = arith.addf %145, %151 : vector<16x16xf32>
    %c0_110 = arith.constant 0 : index
    %c22 = arith.constant 22 : index
    %153 = memref.load %arg1[%c0_110, %c22] : memref<1x64xf32, #tpu.memory_space<smem>>
    %c0_111 = arith.constant 0 : index
    %c22_112 = arith.constant 22 : index
    %c0_113 = arith.constant 0 : index
    %c0_114 = arith.constant 0 : index
    %154 = vector.load %arg3[%c0_111, %c22_112, %c0_113, %c0_114] : memref<1x64x16x16xbf16, #tpu.memory_space<vmem>>, vector<1x1x16x16xbf16>
    %155 = vector.shape_cast %154 : vector<1x1x16x16xbf16> to vector<16x16xbf16>
    %156 = arith.extf %155 : vector<16x16xbf16> to vector<16x16xf32>
    %157 = vector.broadcast %153 : f32 to vector<16x16xf32>
    %158 = arith.mulf %157, %156 : vector<16x16xf32>
    %159 = arith.addf %152, %158 : vector<16x16xf32>
    %c0_115 = arith.constant 0 : index
    %c23 = arith.constant 23 : index
    %160 = memref.load %arg1[%c0_115, %c23] : memref<1x64xf32, #tpu.memory_space<smem>>
    %c0_116 = arith.constant 0 : index
    %c23_117 = arith.constant 23 : index
    %c0_118 = arith.constant 0 : index
    %c0_119 = arith.constant 0 : index
    %161 = vector.load %arg3[%c0_116, %c23_117, %c0_118, %c0_119] : memref<1x64x16x16xbf16, #tpu.memory_space<vmem>>, vector<1x1x16x16xbf16>
    %162 = vector.shape_cast %161 : vector<1x1x16x16xbf16> to vector<16x16xbf16>
    %163 = arith.extf %162 : vector<16x16xbf16> to vector<16x16xf32>
    %164 = vector.broadcast %160 : f32 to vector<16x16xf32>
    %165 = arith.mulf %164, %163 : vector<16x16xf32>
    %166 = arith.addf %159, %165 : vector<16x16xf32>
    %c0_120 = arith.constant 0 : index
    %c24 = arith.constant 24 : index
    %167 = memref.load %arg1[%c0_120, %c24] : memref<1x64xf32, #tpu.memory_space<smem>>
    %c0_121 = arith.constant 0 : index
    %c24_122 = arith.constant 24 : index
    %c0_123 = arith.constant 0 : index
    %c0_124 = arith.constant 0 : index
    %168 = vector.load %arg3[%c0_121, %c24_122, %c0_123, %c0_124] : memref<1x64x16x16xbf16, #tpu.memory_space<vmem>>, vector<1x1x16x16xbf16>
    %169 = vector.shape_cast %168 : vector<1x1x16x16xbf16> to vector<16x16xbf16>
    %170 = arith.extf %169 : vector<16x16xbf16> to vector<16x16xf32>
    %171 = vector.broadcast %167 : f32 to vector<16x16xf32>
    %172 = arith.mulf %171, %170 : vector<16x16xf32>
    %173 = arith.addf %166, %172 : vector<16x16xf32>
    %c0_125 = arith.constant 0 : index
    %c25 = arith.constant 25 : index
    %174 = memref.load %arg1[%c0_125, %c25] : memref<1x64xf32, #tpu.memory_space<smem>>
    %c0_126 = arith.constant 0 : index
    %c25_127 = arith.constant 25 : index
    %c0_128 = arith.constant 0 : index
    %c0_129 = arith.constant 0 : index
    %175 = vector.load %arg3[%c0_126, %c25_127, %c0_128, %c0_129] : memref<1x64x16x16xbf16, #tpu.memory_space<vmem>>, vector<1x1x16x16xbf16>
    %176 = vector.shape_cast %175 : vector<1x1x16x16xbf16> to vector<16x16xbf16>
    %177 = arith.extf %176 : vector<16x16xbf16> to vector<16x16xf32>
    %178 = vector.broadcast %174 : f32 to vector<16x16xf32>
    %179 = arith.mulf %178, %177 : vector<16x16xf32>
    %180 = arith.addf %173, %179 : vector<16x16xf32>
    %c0_130 = arith.constant 0 : index
    %c26 = arith.constant 26 : index
    %181 = memref.load %arg1[%c0_130, %c26] : memref<1x64xf32, #tpu.memory_space<smem>>
    %c0_131 = arith.constant 0 : index
    %c26_132 = arith.constant 26 : index
    %c0_133 = arith.constant 0 : index
    %c0_134 = arith.constant 0 : index
    %182 = vector.load %arg3[%c0_131, %c26_132, %c0_133, %c0_134] : memref<1x64x16x16xbf16, #tpu.memory_space<vmem>>, vector<1x1x16x16xbf16>
    %183 = vector.shape_cast %182 : vector<1x1x16x16xbf16> to vector<16x16xbf16>
    %184 = arith.extf %183 : vector<16x16xbf16> to vector<16x16xf32>
    %185 = vector.broadcast %181 : f32 to vector<16x16xf32>
    %186 = arith.mulf %185, %184 : vector<16x16xf32>
    %187 = arith.addf %180, %186 : vector<16x16xf32>
    %c0_135 = arith.constant 0 : index
    %c27 = arith.constant 27 : index
    %188 = memref.load %arg1[%c0_135, %c27] : memref<1x64xf32, #tpu.memory_space<smem>>
    %c0_136 = arith.constant 0 : index
    %c27_137 = arith.constant 27 : index
    %c0_138 = arith.constant 0 : index
    %c0_139 = arith.constant 0 : index
    %189 = vector.load %arg3[%c0_136, %c27_137, %c0_138, %c0_139] : memref<1x64x16x16xbf16, #tpu.memory_space<vmem>>, vector<1x1x16x16xbf16>
    %190 = vector.shape_cast %189 : vector<1x1x16x16xbf16> to vector<16x16xbf16>
    %191 = arith.extf %190 : vector<16x16xbf16> to vector<16x16xf32>
    %192 = vector.broadcast %188 : f32 to vector<16x16xf32>
    %193 = arith.mulf %192, %191 : vector<16x16xf32>
    %194 = arith.addf %187, %193 : vector<16x16xf32>
    %c0_140 = arith.constant 0 : index
    %c28 = arith.constant 28 : index
    %195 = memref.load %arg1[%c0_140, %c28] : memref<1x64xf32, #tpu.memory_space<smem>>
    %c0_141 = arith.constant 0 : index
    %c28_142 = arith.constant 28 : index
    %c0_143 = arith.constant 0 : index
    %c0_144 = arith.constant 0 : index
    %196 = vector.load %arg3[%c0_141, %c28_142, %c0_143, %c0_144] : memref<1x64x16x16xbf16, #tpu.memory_space<vmem>>, vector<1x1x16x16xbf16>
    %197 = vector.shape_cast %196 : vector<1x1x16x16xbf16> to vector<16x16xbf16>
    %198 = arith.extf %197 : vector<16x16xbf16> to vector<16x16xf32>
    %199 = vector.broadcast %195 : f32 to vector<16x16xf32>
    %200 = arith.mulf %199, %198 : vector<16x16xf32>
    %201 = arith.addf %194, %200 : vector<16x16xf32>
    %c0_145 = arith.constant 0 : index
    %c29 = arith.constant 29 : index
    %202 = memref.load %arg1[%c0_145, %c29] : memref<1x64xf32, #tpu.memory_space<smem>>
    %c0_146 = arith.constant 0 : index
    %c29_147 = arith.constant 29 : index
    %c0_148 = arith.constant 0 : index
    %c0_149 = arith.constant 0 : index
    %203 = vector.load %arg3[%c0_146, %c29_147, %c0_148, %c0_149] : memref<1x64x16x16xbf16, #tpu.memory_space<vmem>>, vector<1x1x16x16xbf16>
    %204 = vector.shape_cast %203 : vector<1x1x16x16xbf16> to vector<16x16xbf16>
    %205 = arith.extf %204 : vector<16x16xbf16> to vector<16x16xf32>
    %206 = vector.broadcast %202 : f32 to vector<16x16xf32>
    %207 = arith.mulf %206, %205 : vector<16x16xf32>
    %208 = arith.addf %201, %207 : vector<16x16xf32>
    %c0_150 = arith.constant 0 : index
    %c30 = arith.constant 30 : index
    %209 = memref.load %arg1[%c0_150, %c30] : memref<1x64xf32, #tpu.memory_space<smem>>
    %c0_151 = arith.constant 0 : index
    %c30_152 = arith.constant 30 : index
    %c0_153 = arith.constant 0 : index
    %c0_154 = arith.constant 0 : index
    %210 = vector.load %arg3[%c0_151, %c30_152, %c0_153, %c0_154] : memref<1x64x16x16xbf16, #tpu.memory_space<vmem>>, vector<1x1x16x16xbf16>
    %211 = vector.shape_cast %210 : vector<1x1x16x16xbf16> to vector<16x16xbf16>
    %212 = arith.extf %211 : vector<16x16xbf16> to vector<16x16xf32>
    %213 = vector.broadcast %209 : f32 to vector<16x16xf32>
    %214 = arith.mulf %213, %212 : vector<16x16xf32>
    %215 = arith.addf %208, %214 : vector<16x16xf32>
    %c0_155 = arith.constant 0 : index
    %c31 = arith.constant 31 : index
    %216 = memref.load %arg1[%c0_155, %c31] : memref<1x64xf32, #tpu.memory_space<smem>>
    %c0_156 = arith.constant 0 : index
    %c31_157 = arith.constant 31 : index
    %c0_158 = arith.constant 0 : index
    %c0_159 = arith.constant 0 : index
    %217 = vector.load %arg3[%c0_156, %c31_157, %c0_158, %c0_159] : memref<1x64x16x16xbf16, #tpu.memory_space<vmem>>, vector<1x1x16x16xbf16>
    %218 = vector.shape_cast %217 : vector<1x1x16x16xbf16> to vector<16x16xbf16>
    %219 = arith.extf %218 : vector<16x16xbf16> to vector<16x16xf32>
    %220 = vector.broadcast %216 : f32 to vector<16x16xf32>
    %221 = arith.mulf %220, %219 : vector<16x16xf32>
    %222 = arith.addf %215, %221 : vector<16x16xf32>
    %c0_160 = arith.constant 0 : index
    %c32 = arith.constant 32 : index
    %223 = memref.load %arg1[%c0_160, %c32] : memref<1x64xf32, #tpu.memory_space<smem>>
    %c0_161 = arith.constant 0 : index
    %c32_162 = arith.constant 32 : index
    %c0_163 = arith.constant 0 : index
    %c0_164 = arith.constant 0 : index
    %224 = vector.load %arg3[%c0_161, %c32_162, %c0_163, %c0_164] : memref<1x64x16x16xbf16, #tpu.memory_space<vmem>>, vector<1x1x16x16xbf16>
    %225 = vector.shape_cast %224 : vector<1x1x16x16xbf16> to vector<16x16xbf16>
    %226 = arith.extf %225 : vector<16x16xbf16> to vector<16x16xf32>
    %227 = vector.broadcast %223 : f32 to vector<16x16xf32>
    %228 = arith.mulf %227, %226 : vector<16x16xf32>
    %229 = arith.addf %222, %228 : vector<16x16xf32>
    %c0_165 = arith.constant 0 : index
    %c33 = arith.constant 33 : index
    %230 = memref.load %arg1[%c0_165, %c33] : memref<1x64xf32, #tpu.memory_space<smem>>
    %c0_166 = arith.constant 0 : index
    %c33_167 = arith.constant 33 : index
    %c0_168 = arith.constant 0 : index
    %c0_169 = arith.constant 0 : index
    %231 = vector.load %arg3[%c0_166, %c33_167, %c0_168, %c0_169] : memref<1x64x16x16xbf16, #tpu.memory_space<vmem>>, vector<1x1x16x16xbf16>
    %232 = vector.shape_cast %231 : vector<1x1x16x16xbf16> to vector<16x16xbf16>
    %233 = arith.extf %232 : vector<16x16xbf16> to vector<16x16xf32>
    %234 = vector.broadcast %230 : f32 to vector<16x16xf32>
    %235 = arith.mulf %234, %233 : vector<16x16xf32>
    %236 = arith.addf %229, %235 : vector<16x16xf32>
    %c0_170 = arith.constant 0 : index
    %c34 = arith.constant 34 : index
    %237 = memref.load %arg1[%c0_170, %c34] : memref<1x64xf32, #tpu.memory_space<smem>>
    %c0_171 = arith.constant 0 : index
    %c34_172 = arith.constant 34 : index
    %c0_173 = arith.constant 0 : index
    %c0_174 = arith.constant 0 : index
    %238 = vector.load %arg3[%c0_171, %c34_172, %c0_173, %c0_174] : memref<1x64x16x16xbf16, #tpu.memory_space<vmem>>, vector<1x1x16x16xbf16>
    %239 = vector.shape_cast %238 : vector<1x1x16x16xbf16> to vector<16x16xbf16>
    %240 = arith.extf %239 : vector<16x16xbf16> to vector<16x16xf32>
    %241 = vector.broadcast %237 : f32 to vector<16x16xf32>
    %242 = arith.mulf %241, %240 : vector<16x16xf32>
    %243 = arith.addf %236, %242 : vector<16x16xf32>
    %c0_175 = arith.constant 0 : index
    %c35 = arith.constant 35 : index
    %244 = memref.load %arg1[%c0_175, %c35] : memref<1x64xf32, #tpu.memory_space<smem>>
    %c0_176 = arith.constant 0 : index
    %c35_177 = arith.constant 35 : index
    %c0_178 = arith.constant 0 : index
    %c0_179 = arith.constant 0 : index
    %245 = vector.load %arg3[%c0_176, %c35_177, %c0_178, %c0_179] : memref<1x64x16x16xbf16, #tpu.memory_space<vmem>>, vector<1x1x16x16xbf16>
    %246 = vector.shape_cast %245 : vector<1x1x16x16xbf16> to vector<16x16xbf16>
    %247 = arith.extf %246 : vector<16x16xbf16> to vector<16x16xf32>
    %248 = vector.broadcast %244 : f32 to vector<16x16xf32>
    %249 = arith.mulf %248, %247 : vector<16x16xf32>
    %250 = arith.addf %243, %249 : vector<16x16xf32>
    %c0_180 = arith.constant 0 : index
    %c36 = arith.constant 36 : index
    %251 = memref.load %arg1[%c0_180, %c36] : memref<1x64xf32, #tpu.memory_space<smem>>
    %c0_181 = arith.constant 0 : index
    %c36_182 = arith.constant 36 : index
    %c0_183 = arith.constant 0 : index
    %c0_184 = arith.constant 0 : index
    %252 = vector.load %arg3[%c0_181, %c36_182, %c0_183, %c0_184] : memref<1x64x16x16xbf16, #tpu.memory_space<vmem>>, vector<1x1x16x16xbf16>
    %253 = vector.shape_cast %252 : vector<1x1x16x16xbf16> to vector<16x16xbf16>
    %254 = arith.extf %253 : vector<16x16xbf16> to vector<16x16xf32>
    %255 = vector.broadcast %251 : f32 to vector<16x16xf32>
    %256 = arith.mulf %255, %254 : vector<16x16xf32>
    %257 = arith.addf %250, %256 : vector<16x16xf32>
    %c0_185 = arith.constant 0 : index
    %c37 = arith.constant 37 : index
    %258 = memref.load %arg1[%c0_185, %c37] : memref<1x64xf32, #tpu.memory_space<smem>>
    %c0_186 = arith.constant 0 : index
    %c37_187 = arith.constant 37 : index
    %c0_188 = arith.constant 0 : index
    %c0_189 = arith.constant 0 : index
    %259 = vector.load %arg3[%c0_186, %c37_187, %c0_188, %c0_189] : memref<1x64x16x16xbf16, #tpu.memory_space<vmem>>, vector<1x1x16x16xbf16>
    %260 = vector.shape_cast %259 : vector<1x1x16x16xbf16> to vector<16x16xbf16>
    %261 = arith.extf %260 : vector<16x16xbf16> to vector<16x16xf32>
    %262 = vector.broadcast %258 : f32 to vector<16x16xf32>
    %263 = arith.mulf %262, %261 : vector<16x16xf32>
    %264 = arith.addf %257, %263 : vector<16x16xf32>
    %c0_190 = arith.constant 0 : index
    %c38 = arith.constant 38 : index
    %265 = memref.load %arg1[%c0_190, %c38] : memref<1x64xf32, #tpu.memory_space<smem>>
    %c0_191 = arith.constant 0 : index
    %c38_192 = arith.constant 38 : index
    %c0_193 = arith.constant 0 : index
    %c0_194 = arith.constant 0 : index
    %266 = vector.load %arg3[%c0_191, %c38_192, %c0_193, %c0_194] : memref<1x64x16x16xbf16, #tpu.memory_space<vmem>>, vector<1x1x16x16xbf16>
    %267 = vector.shape_cast %266 : vector<1x1x16x16xbf16> to vector<16x16xbf16>
    %268 = arith.extf %267 : vector<16x16xbf16> to vector<16x16xf32>
    %269 = vector.broadcast %265 : f32 to vector<16x16xf32>
    %270 = arith.mulf %269, %268 : vector<16x16xf32>
    %271 = arith.addf %264, %270 : vector<16x16xf32>
    %c0_195 = arith.constant 0 : index
    %c39 = arith.constant 39 : index
    %272 = memref.load %arg1[%c0_195, %c39] : memref<1x64xf32, #tpu.memory_space<smem>>
    %c0_196 = arith.constant 0 : index
    %c39_197 = arith.constant 39 : index
    %c0_198 = arith.constant 0 : index
    %c0_199 = arith.constant 0 : index
    %273 = vector.load %arg3[%c0_196, %c39_197, %c0_198, %c0_199] : memref<1x64x16x16xbf16, #tpu.memory_space<vmem>>, vector<1x1x16x16xbf16>
    %274 = vector.shape_cast %273 : vector<1x1x16x16xbf16> to vector<16x16xbf16>
    %275 = arith.extf %274 : vector<16x16xbf16> to vector<16x16xf32>
    %276 = vector.broadcast %272 : f32 to vector<16x16xf32>
    %277 = arith.mulf %276, %275 : vector<16x16xf32>
    %278 = arith.addf %271, %277 : vector<16x16xf32>
    %c0_200 = arith.constant 0 : index
    %c40 = arith.constant 40 : index
    %279 = memref.load %arg1[%c0_200, %c40] : memref<1x64xf32, #tpu.memory_space<smem>>
    %c0_201 = arith.constant 0 : index
    %c40_202 = arith.constant 40 : index
    %c0_203 = arith.constant 0 : index
    %c0_204 = arith.constant 0 : index
    %280 = vector.load %arg3[%c0_201, %c40_202, %c0_203, %c0_204] : memref<1x64x16x16xbf16, #tpu.memory_space<vmem>>, vector<1x1x16x16xbf16>
    %281 = vector.shape_cast %280 : vector<1x1x16x16xbf16> to vector<16x16xbf16>
    %282 = arith.extf %281 : vector<16x16xbf16> to vector<16x16xf32>
    %283 = vector.broadcast %279 : f32 to vector<16x16xf32>
    %284 = arith.mulf %283, %282 : vector<16x16xf32>
    %285 = arith.addf %278, %284 : vector<16x16xf32>
    %c0_205 = arith.constant 0 : index
    %c41 = arith.constant 41 : index
    %286 = memref.load %arg1[%c0_205, %c41] : memref<1x64xf32, #tpu.memory_space<smem>>
    %c0_206 = arith.constant 0 : index
    %c41_207 = arith.constant 41 : index
    %c0_208 = arith.constant 0 : index
    %c0_209 = arith.constant 0 : index
    %287 = vector.load %arg3[%c0_206, %c41_207, %c0_208, %c0_209] : memref<1x64x16x16xbf16, #tpu.memory_space<vmem>>, vector<1x1x16x16xbf16>
    %288 = vector.shape_cast %287 : vector<1x1x16x16xbf16> to vector<16x16xbf16>
    %289 = arith.extf %288 : vector<16x16xbf16> to vector<16x16xf32>
    %290 = vector.broadcast %286 : f32 to vector<16x16xf32>
    %291 = arith.mulf %290, %289 : vector<16x16xf32>
    %292 = arith.addf %285, %291 : vector<16x16xf32>
    %c0_210 = arith.constant 0 : index
    %c42 = arith.constant 42 : index
    %293 = memref.load %arg1[%c0_210, %c42] : memref<1x64xf32, #tpu.memory_space<smem>>
    %c0_211 = arith.constant 0 : index
    %c42_212 = arith.constant 42 : index
    %c0_213 = arith.constant 0 : index
    %c0_214 = arith.constant 0 : index
    %294 = vector.load %arg3[%c0_211, %c42_212, %c0_213, %c0_214] : memref<1x64x16x16xbf16, #tpu.memory_space<vmem>>, vector<1x1x16x16xbf16>
    %295 = vector.shape_cast %294 : vector<1x1x16x16xbf16> to vector<16x16xbf16>
    %296 = arith.extf %295 : vector<16x16xbf16> to vector<16x16xf32>
    %297 = vector.broadcast %293 : f32 to vector<16x16xf32>
    %298 = arith.mulf %297, %296 : vector<16x16xf32>
    %299 = arith.addf %292, %298 : vector<16x16xf32>
    %c0_215 = arith.constant 0 : index
    %c43 = arith.constant 43 : index
    %300 = memref.load %arg1[%c0_215, %c43] : memref<1x64xf32, #tpu.memory_space<smem>>
    %c0_216 = arith.constant 0 : index
    %c43_217 = arith.constant 43 : index
    %c0_218 = arith.constant 0 : index
    %c0_219 = arith.constant 0 : index
    %301 = vector.load %arg3[%c0_216, %c43_217, %c0_218, %c0_219] : memref<1x64x16x16xbf16, #tpu.memory_space<vmem>>, vector<1x1x16x16xbf16>
    %302 = vector.shape_cast %301 : vector<1x1x16x16xbf16> to vector<16x16xbf16>
    %303 = arith.extf %302 : vector<16x16xbf16> to vector<16x16xf32>
    %304 = vector.broadcast %300 : f32 to vector<16x16xf32>
    %305 = arith.mulf %304, %303 : vector<16x16xf32>
    %306 = arith.addf %299, %305 : vector<16x16xf32>
    %c0_220 = arith.constant 0 : index
    %c44 = arith.constant 44 : index
    %307 = memref.load %arg1[%c0_220, %c44] : memref<1x64xf32, #tpu.memory_space<smem>>
    %c0_221 = arith.constant 0 : index
    %c44_222 = arith.constant 44 : index
    %c0_223 = arith.constant 0 : index
    %c0_224 = arith.constant 0 : index
    %308 = vector.load %arg3[%c0_221, %c44_222, %c0_223, %c0_224] : memref<1x64x16x16xbf16, #tpu.memory_space<vmem>>, vector<1x1x16x16xbf16>
    %309 = vector.shape_cast %308 : vector<1x1x16x16xbf16> to vector<16x16xbf16>
    %310 = arith.extf %309 : vector<16x16xbf16> to vector<16x16xf32>
    %311 = vector.broadcast %307 : f32 to vector<16x16xf32>
    %312 = arith.mulf %311, %310 : vector<16x16xf32>
    %313 = arith.addf %306, %312 : vector<16x16xf32>
    %c0_225 = arith.constant 0 : index
    %c45 = arith.constant 45 : index
    %314 = memref.load %arg1[%c0_225, %c45] : memref<1x64xf32, #tpu.memory_space<smem>>
    %c0_226 = arith.constant 0 : index
    %c45_227 = arith.constant 45 : index
    %c0_228 = arith.constant 0 : index
    %c0_229 = arith.constant 0 : index
    %315 = vector.load %arg3[%c0_226, %c45_227, %c0_228, %c0_229] : memref<1x64x16x16xbf16, #tpu.memory_space<vmem>>, vector<1x1x16x16xbf16>
    %316 = vector.shape_cast %315 : vector<1x1x16x16xbf16> to vector<16x16xbf16>
    %317 = arith.extf %316 : vector<16x16xbf16> to vector<16x16xf32>
    %318 = vector.broadcast %314 : f32 to vector<16x16xf32>
    %319 = arith.mulf %318, %317 : vector<16x16xf32>
    %320 = arith.addf %313, %319 : vector<16x16xf32>
    %c0_230 = arith.constant 0 : index
    %c46 = arith.constant 46 : index
    %321 = memref.load %arg1[%c0_230, %c46] : memref<1x64xf32, #tpu.memory_space<smem>>
    %c0_231 = arith.constant 0 : index
    %c46_232 = arith.constant 46 : index
    %c0_233 = arith.constant 0 : index
    %c0_234 = arith.constant 0 : index
    %322 = vector.load %arg3[%c0_231, %c46_232, %c0_233, %c0_234] : memref<1x64x16x16xbf16, #tpu.memory_space<vmem>>, vector<1x1x16x16xbf16>
    %323 = vector.shape_cast %322 : vector<1x1x16x16xbf16> to vector<16x16xbf16>
    %324 = arith.extf %323 : vector<16x16xbf16> to vector<16x16xf32>
    %325 = vector.broadcast %321 : f32 to vector<16x16xf32>
    %326 = arith.mulf %325, %324 : vector<16x16xf32>
    %327 = arith.addf %320, %326 : vector<16x16xf32>
    %c0_235 = arith.constant 0 : index
    %c47 = arith.constant 47 : index
    %328 = memref.load %arg1[%c0_235, %c47] : memref<1x64xf32, #tpu.memory_space<smem>>
    %c0_236 = arith.constant 0 : index
    %c47_237 = arith.constant 47 : index
    %c0_238 = arith.constant 0 : index
    %c0_239 = arith.constant 0 : index
    %329 = vector.load %arg3[%c0_236, %c47_237, %c0_238, %c0_239] : memref<1x64x16x16xbf16, #tpu.memory_space<vmem>>, vector<1x1x16x16xbf16>
    %330 = vector.shape_cast %329 : vector<1x1x16x16xbf16> to vector<16x16xbf16>
    %331 = arith.extf %330 : vector<16x16xbf16> to vector<16x16xf32>
    %332 = vector.broadcast %328 : f32 to vector<16x16xf32>
    %333 = arith.mulf %332, %331 : vector<16x16xf32>
    %334 = arith.addf %327, %333 : vector<16x16xf32>
    %c0_240 = arith.constant 0 : index
    %c48 = arith.constant 48 : index
    %335 = memref.load %arg1[%c0_240, %c48] : memref<1x64xf32, #tpu.memory_space<smem>>
    %c0_241 = arith.constant 0 : index
    %c48_242 = arith.constant 48 : index
    %c0_243 = arith.constant 0 : index
    %c0_244 = arith.constant 0 : index
    %336 = vector.load %arg3[%c0_241, %c48_242, %c0_243, %c0_244] : memref<1x64x16x16xbf16, #tpu.memory_space<vmem>>, vector<1x1x16x16xbf16>
    %337 = vector.shape_cast %336 : vector<1x1x16x16xbf16> to vector<16x16xbf16>
    %338 = arith.extf %337 : vector<16x16xbf16> to vector<16x16xf32>
    %339 = vector.broadcast %335 : f32 to vector<16x16xf32>
    %340 = arith.mulf %339, %338 : vector<16x16xf32>
    %341 = arith.addf %334, %340 : vector<16x16xf32>
    %c0_245 = arith.constant 0 : index
    %c49 = arith.constant 49 : index
    %342 = memref.load %arg1[%c0_245, %c49] : memref<1x64xf32, #tpu.memory_space<smem>>
    %c0_246 = arith.constant 0 : index
    %c49_247 = arith.constant 49 : index
    %c0_248 = arith.constant 0 : index
    %c0_249 = arith.constant 0 : index
    %343 = vector.load %arg3[%c0_246, %c49_247, %c0_248, %c0_249] : memref<1x64x16x16xbf16, #tpu.memory_space<vmem>>, vector<1x1x16x16xbf16>
    %344 = vector.shape_cast %343 : vector<1x1x16x16xbf16> to vector<16x16xbf16>
    %345 = arith.extf %344 : vector<16x16xbf16> to vector<16x16xf32>
    %346 = vector.broadcast %342 : f32 to vector<16x16xf32>
    %347 = arith.mulf %346, %345 : vector<16x16xf32>
    %348 = arith.addf %341, %347 : vector<16x16xf32>
    %c0_250 = arith.constant 0 : index
    %c50 = arith.constant 50 : index
    %349 = memref.load %arg1[%c0_250, %c50] : memref<1x64xf32, #tpu.memory_space<smem>>
    %c0_251 = arith.constant 0 : index
    %c50_252 = arith.constant 50 : index
    %c0_253 = arith.constant 0 : index
    %c0_254 = arith.constant 0 : index
    %350 = vector.load %arg3[%c0_251, %c50_252, %c0_253, %c0_254] : memref<1x64x16x16xbf16, #tpu.memory_space<vmem>>, vector<1x1x16x16xbf16>
    %351 = vector.shape_cast %350 : vector<1x1x16x16xbf16> to vector<16x16xbf16>
    %352 = arith.extf %351 : vector<16x16xbf16> to vector<16x16xf32>
    %353 = vector.broadcast %349 : f32 to vector<16x16xf32>
    %354 = arith.mulf %353, %352 : vector<16x16xf32>
    %355 = arith.addf %348, %354 : vector<16x16xf32>
    %c0_255 = arith.constant 0 : index
    %c51 = arith.constant 51 : index
    %356 = memref.load %arg1[%c0_255, %c51] : memref<1x64xf32, #tpu.memory_space<smem>>
    %c0_256 = arith.constant 0 : index
    %c51_257 = arith.constant 51 : index
    %c0_258 = arith.constant 0 : index
    %c0_259 = arith.constant 0 : index
    %357 = vector.load %arg3[%c0_256, %c51_257, %c0_258, %c0_259] : memref<1x64x16x16xbf16, #tpu.memory_space<vmem>>, vector<1x1x16x16xbf16>
    %358 = vector.shape_cast %357 : vector<1x1x16x16xbf16> to vector<16x16xbf16>
    %359 = arith.extf %358 : vector<16x16xbf16> to vector<16x16xf32>
    %360 = vector.broadcast %356 : f32 to vector<16x16xf32>
    %361 = arith.mulf %360, %359 : vector<16x16xf32>
    %362 = arith.addf %355, %361 : vector<16x16xf32>
    %c0_260 = arith.constant 0 : index
    %c52 = arith.constant 52 : index
    %363 = memref.load %arg1[%c0_260, %c52] : memref<1x64xf32, #tpu.memory_space<smem>>
    %c0_261 = arith.constant 0 : index
    %c52_262 = arith.constant 52 : index
    %c0_263 = arith.constant 0 : index
    %c0_264 = arith.constant 0 : index
    %364 = vector.load %arg3[%c0_261, %c52_262, %c0_263, %c0_264] : memref<1x64x16x16xbf16, #tpu.memory_space<vmem>>, vector<1x1x16x16xbf16>
    %365 = vector.shape_cast %364 : vector<1x1x16x16xbf16> to vector<16x16xbf16>
    %366 = arith.extf %365 : vector<16x16xbf16> to vector<16x16xf32>
    %367 = vector.broadcast %363 : f32 to vector<16x16xf32>
    %368 = arith.mulf %367, %366 : vector<16x16xf32>
    %369 = arith.addf %362, %368 : vector<16x16xf32>
    %c0_265 = arith.constant 0 : index
    %c53 = arith.constant 53 : index
    %370 = memref.load %arg1[%c0_265, %c53] : memref<1x64xf32, #tpu.memory_space<smem>>
    %c0_266 = arith.constant 0 : index
    %c53_267 = arith.constant 53 : index
    %c0_268 = arith.constant 0 : index
    %c0_269 = arith.constant 0 : index
    %371 = vector.load %arg3[%c0_266, %c53_267, %c0_268, %c0_269] : memref<1x64x16x16xbf16, #tpu.memory_space<vmem>>, vector<1x1x16x16xbf16>
    %372 = vector.shape_cast %371 : vector<1x1x16x16xbf16> to vector<16x16xbf16>
    %373 = arith.extf %372 : vector<16x16xbf16> to vector<16x16xf32>
    %374 = vector.broadcast %370 : f32 to vector<16x16xf32>
    %375 = arith.mulf %374, %373 : vector<16x16xf32>
    %376 = arith.addf %369, %375 : vector<16x16xf32>
    %c0_270 = arith.constant 0 : index
    %c54 = arith.constant 54 : index
    %377 = memref.load %arg1[%c0_270, %c54] : memref<1x64xf32, #tpu.memory_space<smem>>
    %c0_271 = arith.constant 0 : index
    %c54_272 = arith.constant 54 : index
    %c0_273 = arith.constant 0 : index
    %c0_274 = arith.constant 0 : index
    %378 = vector.load %arg3[%c0_271, %c54_272, %c0_273, %c0_274] : memref<1x64x16x16xbf16, #tpu.memory_space<vmem>>, vector<1x1x16x16xbf16>
    %379 = vector.shape_cast %378 : vector<1x1x16x16xbf16> to vector<16x16xbf16>
    %380 = arith.extf %379 : vector<16x16xbf16> to vector<16x16xf32>
    %381 = vector.broadcast %377 : f32 to vector<16x16xf32>
    %382 = arith.mulf %381, %380 : vector<16x16xf32>
    %383 = arith.addf %376, %382 : vector<16x16xf32>
    %c0_275 = arith.constant 0 : index
    %c55 = arith.constant 55 : index
    %384 = memref.load %arg1[%c0_275, %c55] : memref<1x64xf32, #tpu.memory_space<smem>>
    %c0_276 = arith.constant 0 : index
    %c55_277 = arith.constant 55 : index
    %c0_278 = arith.constant 0 : index
    %c0_279 = arith.constant 0 : index
    %385 = vector.load %arg3[%c0_276, %c55_277, %c0_278, %c0_279] : memref<1x64x16x16xbf16, #tpu.memory_space<vmem>>, vector<1x1x16x16xbf16>
    %386 = vector.shape_cast %385 : vector<1x1x16x16xbf16> to vector<16x16xbf16>
    %387 = arith.extf %386 : vector<16x16xbf16> to vector<16x16xf32>
    %388 = vector.broadcast %384 : f32 to vector<16x16xf32>
    %389 = arith.mulf %388, %387 : vector<16x16xf32>
    %390 = arith.addf %383, %389 : vector<16x16xf32>
    %c0_280 = arith.constant 0 : index
    %c56 = arith.constant 56 : index
    %391 = memref.load %arg1[%c0_280, %c56] : memref<1x64xf32, #tpu.memory_space<smem>>
    %c0_281 = arith.constant 0 : index
    %c56_282 = arith.constant 56 : index
    %c0_283 = arith.constant 0 : index
    %c0_284 = arith.constant 0 : index
    %392 = vector.load %arg3[%c0_281, %c56_282, %c0_283, %c0_284] : memref<1x64x16x16xbf16, #tpu.memory_space<vmem>>, vector<1x1x16x16xbf16>
    %393 = vector.shape_cast %392 : vector<1x1x16x16xbf16> to vector<16x16xbf16>
    %394 = arith.extf %393 : vector<16x16xbf16> to vector<16x16xf32>
    %395 = vector.broadcast %391 : f32 to vector<16x16xf32>
    %396 = arith.mulf %395, %394 : vector<16x16xf32>
    %397 = arith.addf %390, %396 : vector<16x16xf32>
    %c0_285 = arith.constant 0 : index
    %c57 = arith.constant 57 : index
    %398 = memref.load %arg1[%c0_285, %c57] : memref<1x64xf32, #tpu.memory_space<smem>>
    %c0_286 = arith.constant 0 : index
    %c57_287 = arith.constant 57 : index
    %c0_288 = arith.constant 0 : index
    %c0_289 = arith.constant 0 : index
    %399 = vector.load %arg3[%c0_286, %c57_287, %c0_288, %c0_289] : memref<1x64x16x16xbf16, #tpu.memory_space<vmem>>, vector<1x1x16x16xbf16>
    %400 = vector.shape_cast %399 : vector<1x1x16x16xbf16> to vector<16x16xbf16>
    %401 = arith.extf %400 : vector<16x16xbf16> to vector<16x16xf32>
    %402 = vector.broadcast %398 : f32 to vector<16x16xf32>
    %403 = arith.mulf %402, %401 : vector<16x16xf32>
    %404 = arith.addf %397, %403 : vector<16x16xf32>
    %c0_290 = arith.constant 0 : index
    %c58 = arith.constant 58 : index
    %405 = memref.load %arg1[%c0_290, %c58] : memref<1x64xf32, #tpu.memory_space<smem>>
    %c0_291 = arith.constant 0 : index
    %c58_292 = arith.constant 58 : index
    %c0_293 = arith.constant 0 : index
    %c0_294 = arith.constant 0 : index
    %406 = vector.load %arg3[%c0_291, %c58_292, %c0_293, %c0_294] : memref<1x64x16x16xbf16, #tpu.memory_space<vmem>>, vector<1x1x16x16xbf16>
    %407 = vector.shape_cast %406 : vector<1x1x16x16xbf16> to vector<16x16xbf16>
    %408 = arith.extf %407 : vector<16x16xbf16> to vector<16x16xf32>
    %409 = vector.broadcast %405 : f32 to vector<16x16xf32>
    %410 = arith.mulf %409, %408 : vector<16x16xf32>
    %411 = arith.addf %404, %410 : vector<16x16xf32>
    %c0_295 = arith.constant 0 : index
    %c59 = arith.constant 59 : index
    %412 = memref.load %arg1[%c0_295, %c59] : memref<1x64xf32, #tpu.memory_space<smem>>
    %c0_296 = arith.constant 0 : index
    %c59_297 = arith.constant 59 : index
    %c0_298 = arith.constant 0 : index
    %c0_299 = arith.constant 0 : index
    %413 = vector.load %arg3[%c0_296, %c59_297, %c0_298, %c0_299] : memref<1x64x16x16xbf16, #tpu.memory_space<vmem>>, vector<1x1x16x16xbf16>
    %414 = vector.shape_cast %413 : vector<1x1x16x16xbf16> to vector<16x16xbf16>
    %415 = arith.extf %414 : vector<16x16xbf16> to vector<16x16xf32>
    %416 = vector.broadcast %412 : f32 to vector<16x16xf32>
    %417 = arith.mulf %416, %415 : vector<16x16xf32>
    %418 = arith.addf %411, %417 : vector<16x16xf32>
    %c0_300 = arith.constant 0 : index
    %c60 = arith.constant 60 : index
    %419 = memref.load %arg1[%c0_300, %c60] : memref<1x64xf32, #tpu.memory_space<smem>>
    %c0_301 = arith.constant 0 : index
    %c60_302 = arith.constant 60 : index
    %c0_303 = arith.constant 0 : index
    %c0_304 = arith.constant 0 : index
    %420 = vector.load %arg3[%c0_301, %c60_302, %c0_303, %c0_304] : memref<1x64x16x16xbf16, #tpu.memory_space<vmem>>, vector<1x1x16x16xbf16>
    %421 = vector.shape_cast %420 : vector<1x1x16x16xbf16> to vector<16x16xbf16>
    %422 = arith.extf %421 : vector<16x16xbf16> to vector<16x16xf32>
    %423 = vector.broadcast %419 : f32 to vector<16x16xf32>
    %424 = arith.mulf %423, %422 : vector<16x16xf32>
    %425 = arith.addf %418, %424 : vector<16x16xf32>
    %c0_305 = arith.constant 0 : index
    %c61 = arith.constant 61 : index
    %426 = memref.load %arg1[%c0_305, %c61] : memref<1x64xf32, #tpu.memory_space<smem>>
    %c0_306 = arith.constant 0 : index
    %c61_307 = arith.constant 61 : index
    %c0_308 = arith.constant 0 : index
    %c0_309 = arith.constant 0 : index
    %427 = vector.load %arg3[%c0_306, %c61_307, %c0_308, %c0_309] : memref<1x64x16x16xbf16, #tpu.memory_space<vmem>>, vector<1x1x16x16xbf16>
    %428 = vector.shape_cast %427 : vector<1x1x16x16xbf16> to vector<16x16xbf16>
    %429 = arith.extf %428 : vector<16x16xbf16> to vector<16x16xf32>
    %430 = vector.broadcast %426 : f32 to vector<16x16xf32>
    %431 = arith.mulf %430, %429 : vector<16x16xf32>
    %432 = arith.addf %425, %431 : vector<16x16xf32>
    %c0_310 = arith.constant 0 : index
    %c62 = arith.constant 62 : index
    %433 = memref.load %arg1[%c0_310, %c62] : memref<1x64xf32, #tpu.memory_space<smem>>
    %c0_311 = arith.constant 0 : index
    %c62_312 = arith.constant 62 : index
    %c0_313 = arith.constant 0 : index
    %c0_314 = arith.constant 0 : index
    %434 = vector.load %arg3[%c0_311, %c62_312, %c0_313, %c0_314] : memref<1x64x16x16xbf16, #tpu.memory_space<vmem>>, vector<1x1x16x16xbf16>
    %435 = vector.shape_cast %434 : vector<1x1x16x16xbf16> to vector<16x16xbf16>
    %436 = arith.extf %435 : vector<16x16xbf16> to vector<16x16xf32>
    %437 = vector.broadcast %433 : f32 to vector<16x16xf32>
    %438 = arith.mulf %437, %436 : vector<16x16xf32>
    %439 = arith.addf %432, %438 : vector<16x16xf32>
    %c0_315 = arith.constant 0 : index
    %c63 = arith.constant 63 : index
    %440 = memref.load %arg1[%c0_315, %c63] : memref<1x64xf32, #tpu.memory_space<smem>>
    %c0_316 = arith.constant 0 : index
    %c63_317 = arith.constant 63 : index
    %c0_318 = arith.constant 0 : index
    %c0_319 = arith.constant 0 : index
    %441 = vector.load %arg3[%c0_316, %c63_317, %c0_318, %c0_319] : memref<1x64x16x16xbf16, #tpu.memory_space<vmem>>, vector<1x1x16x16xbf16>
    %442 = vector.shape_cast %441 : vector<1x1x16x16xbf16> to vector<16x16xbf16>
    %443 = arith.extf %442 : vector<16x16xbf16> to vector<16x16xf32>
    %444 = vector.broadcast %440 : f32 to vector<16x16xf32>
    %445 = arith.mulf %444, %443 : vector<16x16xf32>
    %446 = arith.addf %439, %445 : vector<16x16xf32>
    %c0_320 = arith.constant 0 : index
    %c0_321 = arith.constant 0 : index
    %447 = vector.load %arg4[%c0_320, %c0_321] : memref<64x16xbf16, #tpu.memory_space<vmem>>, vector<64x16xbf16>
    %448 = arith.truncf %446 : vector<16x16xf32> to vector<16x16xbf16>
    %cst = arith.constant dense<0.000000e+00> : vector<64x16xf32>
    %449 = tpu.matmul %447, %448, %cst {dimension_numbers = #tpu.dot_dimension_numbers<[1], [0], [0], [1], [0, 0, 1, 1], [], []>} : vector<64x16xbf16>, vector<16x16xbf16>, vector<64x16xf32> -> vector<64x16xf32>
    %450 = arith.truncf %449 : vector<64x16xf32> to vector<64x16xbf16>
    %c0_322 = arith.constant 0 : index
    %c0_323 = arith.constant 0 : index
    %451 = vector.load %arg5[%c0_322, %c0_323] : memref<16x64xbf16, #tpu.memory_space<vmem>>, vector<16x64xbf16>
    %cst_324 = arith.constant dense<0.000000e+00> : vector<64x64xf32>
    %452 = tpu.matmul %450, %451, %cst_324 {dimension_numbers = #tpu.dot_dimension_numbers<[1], [0], [0], [1], [0, 0, 1, 1], [], []>} : vector<64x16xbf16>, vector<16x64xbf16>, vector<64x64xf32> -> vector<64x64xf32>
    %c0_325 = arith.constant 0 : index
    %453 = memref.load %arg2[%c0_325] : memref<1xf32, #tpu.memory_space<smem>>
    %454 = vector.broadcast %453 : f32 to vector<64x64xf32>
    %455 = arith.addf %452, %454 : vector<64x64xf32>
    %c0_326 = arith.constant 0 : index
    %c0_327 = arith.constant 0 : index
    %c0_328 = arith.constant 0 : index
    %456 = vector.load %arg6[%c0_326, %c0_327, %c0_328] : memref<1x64x64xf32, #tpu.memory_space<vmem>>, vector<1x64x64xf32>
    %457 = vector.shape_cast %456 : vector<1x64x64xf32> to vector<64x64xf32>
    %458 = vector.shape_cast %455 : vector<64x64xf32> to vector<1x64x64xf32>
    tpu.vector_store %arg6[%c0_326, %c0_327, %c0_328], %458 {strides = array<i32>} : memref<1x64x64xf32, #tpu.memory_space<vmem>>, vector<1x64x64xf32>,
    return
  }
  func.func @transform_0(%arg0: i32) -> (i32, i32) {
    %c0_i32 = arith.constant 0 : i32
    %c0_i32_0 = arith.constant 0 : i32
    %c0_i32_1 = arith.constant 0 : i32
    return %c0_i32, %c0_i32_0 : i32, i32
  }
  func.func @transform_1(%arg0: i32) -> i32 {
    %c0_i32 = arith.constant 0 : i32
    %c0_i32_0 = arith.constant 0 : i32
    return %c0_i32 : i32
  }
  func.func @transform_2(%arg0: i32) -> (i32, i32, i32, i32) {
    %c0_i32 = arith.constant 0 : i32
    %c0_i32_0 = arith.constant 0 : i32
    %c0_i32_1 = arith.constant 0 : i32
    %c0_i32_2 = arith.constant 0 : i32
    return %arg0, %c0_i32, %c0_i32_0, %c0_i32_1 : i32, i32, i32, i32
  }
  func.func @transform_3(%arg0: i32) -> (i32, i32) {
    %c0_i32 = arith.constant 0 : i32
    %c0_i32_0 = arith.constant 0 : i32
    %c0_i32_1 = arith.constant 0 : i32
    return %c0_i32, %c0_i32_0 : i32, i32
  }
  func.func @transform_4(%arg0: i32) -> (i32, i32) {
    %c0_i32 = arith.constant 0 : i32
    %c0_i32_0 = arith.constant 0 : i32
    %c0_i32_1 = arith.constant 0 : i32
    return %c0_i32, %c0_i32_0 : i32, i32
  }
  func.func @transform_5(%arg0: i32) -> (i32, i32, i32) {
    %c0_i32 = arith.constant 0 : i32
    %c0_i32_0 = arith.constant 0 : i32
    %c0_i32_1 = arith.constant 0 : i32
    return %arg0, %c0_i32, %c0_i32_0 : i32, i32, i32
  }
}

</mosaic_0001>

<llo_original>
// kernel: tpu_custom_call.1
$region0: #{tpu_custom_call.1}
  #allocation0 [shape = 'u32[]', space=smem, size = 0x4, offset = 0x4, fixed_abs, tag = 'smem constant byte address 0x4 - core index']
  #allocation1 [shape = 'u32[144,128]{1,0:T(1,128)}', space=vmem, size = 0x12000, scoped, tag = 'internal scratch']
  #allocation2 [shape = 'f32[1]{0:T(128)S(6)}', space=smem, size = 0x200, scoped, tag = 'scoped memory for tpu_custom_call.1']
  %s0 = inlined_call_operand.hbm [shape: f32[1,64], index: 0, kind: input, shape index: {}]
  %s1 = inlined_call_operand.<no memory space> [shape: f32[1], index: 1, kind: input, shape index: {}]
  %s2 = inlined_call_operand.hbm [shape: bf16[2,64,16,16], index: 2, kind: input, shape index: {}]
  %s3 = inlined_call_operand.hbm [shape: bf16[64,16], index: 3, kind: input, shape index: {}]
  %s4 = inlined_call_operand.hbm [shape: bf16[16,64], index: 4, kind: input, shape index: {}]
  %s5 = inlined_call_operand.hbm [shape: f32[2,64,64], index: 5, kind: output, shape index: {}]
  %s6 = sld [smem:[#allocation0]]
  $region69: #{tpu_custom_call.1} parent=0
    _
  %s8 = ssub.s32 1, %s6
  %s9 = scalar_select 0, %s8, %s6
  %10 = sst [smem:[#allocation2]] %s1
  $region1: #{tpu_custom_call.1} parent=0
    #allocation3 [shape = 'u8[512]{0}', space=smem, size = 0x200, scoped, tag = 'input window, operand 0, single buffered']
    #allocation4 [shape = 's32[2]{0}', space=sflag, size = 0x8, scoped, tag = 'scoped memory for tpu_custom_call.1']
    #allocation5 [shape = 's32[2]{0}', space=sflag, size = 0x8, scoped, tag = 'scoped memory for tpu_custom_call.1']
    #allocation6 [shape = 's32[2]{0}', space=sflag, size = 0x8, scoped, tag = 'scoped memory for tpu_custom_call.1']
    #allocation7 [shape = 'u8[524288]{0}', space=vmem, size = 0x80000, scoped, tag = 'input window, operand 2']
    #allocation8 [shape = 'u8[16384]{0}', space=vmem, size = 0x4000, scoped, tag = 'input window, operand 3, single buffered']
    #allocation9 [shape = 's32[1]{0}', space=sflag, size = 0x4, scoped, tag = 'scoped memory for tpu_custom_call.1']
    #allocation10 [shape = 'u8[4096]{0}', space=vmem, size = 0x1000, scoped, tag = 'input window, operand 4, single buffered']
    #allocation11 [shape = 'u8[65536]{0}', space=vmem, size = 0x10000, scoped, tag = 'output window, operand 0']
    %11 = vsyncpa [#allocation6], 0
    %12 = vsyncpa [#allocation4], 0
    %s13 = scalar_lea.sflag [#allocation4], 1
    %14 = vsyncpa %s13, 0
    %15 = vsyncpa [#allocation9], 0
    %16 = vsyncpa [#allocation5], 0
    %s17 = scalar_lea.sflag [#allocation5], 1
    %18 = vsyncpa %s17, 0
    loop: start=0, step=1, limit=4
    $region2: #{tpu_custom_call.1} parent=1 // loop_pre_header
      _
    $region3: #{tpu_custom_call.1} parent=1 // loop_header
      %s20 = sphi 0, %s24
      %p21 = scmp.ge.s32.totalorder %s20, 4
      %s28 = sphi 0, %s28
      %s30 = sphi 0, %s28
      %s31 = sphi 0, %s30
      %s45 = sphi 0, %s31
      %s49 = sphi 0, %s49
      %s51 = sphi 0, %s49
      %s52 = sphi 0, %s51
      %s66 = sphi 0, %s52
      %s72 = sphi 0, %s74
      %s75 = sphi 0, %s72
      %s76 = sphi 0, %s75
      %s92 = sphi 0, %s76
      %s96 = sphi 0, %s96
      %s98 = sphi 0, %s96
      %s99 = sphi 0, %s98
      %s113 = sphi 0, %s99
      %s117 = sphi 0, %s117
      %s119 = sphi 0, %s117
      %s120 = sphi 0, %s119
      %s134 = sphi 0, %s120
      %s140 = sphi 0, %s142
      %s143 = sphi 0, %s140
      %s144 = sphi 0, %s143
      %s160 = sphi 0, %s144
    $region4: #{tpu_custom_call.1} parent=1 // loop_header_branch
      %23 = sbr.rel (%p21) target = $region8
    $region5: #{tpu_custom_call.1} parent=1 // loop_body
      %s25 = ssub.s32 %s20, 1
      %s26 = ssub.s32 %s20, 2
      %s27 = sadd.s32 %s20, 1
      %s29 = sadd.s32 %s28, 1
      %p32 = scmp.eq.s32.totalorder %s20, 1
      %p33 = scmp.ne.s32.totalorder %s28, %s30
      %p34 = scmp.eq.s32.totalorder %s20, 0
      %p35 = por %p33, %p34
      %p36 = scmp.ne.s32.totalorder %s28, %s30
      %p37 = scmp.eq.s32.totalorder %s25, 1
      %p38 = por %p36, %p37
      %p39 = scmp.ne.s32.totalorder %s30, %s31
      %p40 = scmp.eq.s32.totalorder %s25, 0
      %p41 = por %p39, %p40
      %p42 = scmp.ne.s32.totalorder %s30, %s31
      %p43 = scmp.eq.s32.totalorder %s26, 1
      %p44 = por %p42, %p43
      %p46 = scmp.ne.s32.totalorder %s31, %s45
      %p47 = scmp.eq.s32.totalorder %s26, 0
      %p48 = por %p46, %p47
      %s50 = sadd.s32 %s49, 1
      %p53 = scmp.eq.s32.totalorder %s20, 1
      %p54 = scmp.ne.s32.totalorder %s49, %s51
      %p55 = scmp.eq.s32.totalorder %s20, 0
      %p56 = por %p54, %p55
      %p57 = scmp.ne.s32.totalorder %s49, %s51
      %p58 = scmp.eq.s32.totalorder %s25, 1
      %p59 = por %p57, %p58
      %p60 = scmp.ne.s32.totalorder %s51, %s52
      %p61 = scmp.eq.s32.totalorder %s25, 0
      %p62 = por %p60, %p61
      %p63 = scmp.ne.s32.totalorder %s51, %s52
      %p64 = scmp.eq.s32.totalorder %s26, 1
      %p65 = por %p63, %p64
      %p67 = scmp.ne.s32.totalorder %s52, %s66
      %p68 = scmp.eq.s32.totalorder %s26, 0
      %p69 = por %p67, %p68
      %s70 = ssub.s32 %s20, %s27
      %p71 = scmp.eq.s32.totalorder %s70, 0
      %s73 = sadd.s32 %s72, 1
      %s74 = scalar_select %p71, %s72, %s73
      %p77 = pneg %p71
      %p78 = scmp.eq.s32.totalorder %s20, 1
      %p79 = por %p77, %p78
      %p80 = scmp.ne.s32.totalorder %s72, %s75
      %p81 = scmp.eq.s32.totalorder %s20, 0
      %p82 = por %p80, %p81
      %p83 = scmp.ne.s32.totalorder %s72, %s75
      %p84 = scmp.eq.s32.totalorder %s25, 1
      %p85 = por %p83, %p84
      %p86 = scmp.ne.s32.totalorder %s75, %s76
      %p87 = scmp.eq.s32.totalorder %s25, 0
      %p88 = por %p86, %p87
      %p89 = scmp.ne.s32.totalorder %s75, %s76
      %p90 = scmp.eq.s32.totalorder %s26, 1
      %p91 = por %p89, %p90
      %p93 = scmp.ne.s32.totalorder %s76, %s92
      %p94 = scmp.eq.s32.totalorder %s26, 0
      %p95 = por %p93, %p94
      %s97 = sadd.s32 %s96, 1
      %p100 = scmp.eq.s32.totalorder %s20, 1
      %p101 = scmp.ne.s32.totalorder %s96, %s98
      %p102 = scmp.eq.s32.totalorder %s20, 0
      %p103 = por %p101, %p102
      %p104 = scmp.ne.s32.totalorder %s96, %s98
      %p105 = scmp.eq.s32.totalorder %s25, 1
      %p106 = por %p104, %p105
      %p107 = scmp.ne.s32.totalorder %s98, %s99
      %p108 = scmp.eq.s32.totalorder %s25, 0
      %p109 = por %p107, %p108
      %p110 = scmp.ne.s32.totalorder %s98, %s99
      %p111 = scmp.eq.s32.totalorder %s26, 1
      %p112 = por %p110, %p111
      %p114 = scmp.ne.s32.totalorder %s99, %s113
      %p115 = scmp.eq.s32.totalorder %s26, 0
      %p116 = por %p114, %p115
      %s118 = sadd.s32 %s117, 1
      %p121 = scmp.eq.s32.totalorder %s20, 1
      %p122 = scmp.ne.s32.totalorder %s117, %s119
      %p123 = scmp.eq.s32.totalorder %s20, 0
      %p124 = por %p122, %p123
      %p125 = scmp.ne.s32.totalorder %s117, %s119
      %p126 = scmp.eq.s32.totalorder %s25, 1
      %p127 = por %p125, %p126
      %p128 = scmp.ne.s32.totalorder %s119, %s120
      %p129 = scmp.eq.s32.totalorder %s25, 0
      %p130 = por %p128, %p129
      %p131 = scmp.ne.s32.totalorder %s119, %s120
      %p132 = scmp.eq.s32.totalorder %s26, 1
      %p133 = por %p131, %p132
      %p135 = scmp.ne.s32.totalorder %s120, %s134
      %p136 = scmp.eq.s32.totalorder %s26, 0
      %p137 = por %p135, %p136
      %s138 = ssub.s32 %s20, %s27
      %p139 = scmp.eq.s32.totalorder %s138, 0
      %s141 = sadd.s32 %s140, 1
      %s142 = scalar_select %p139, %s140, %s141
      %p145 = pneg %p139
      %p146 = scmp.eq.s32.totalorder %s20, 1
      %p147 = por %p145, %p146
      %p148 = scmp.ne.s32.totalorder %s140, %s143
      %p149 = scmp.eq.s32.totalorder %s20, 0
      %p150 = por %p148, %p149
      %p151 = scmp.ne.s32.totalorder %s140, %s143
      %p152 = scmp.eq.s32.totalorder %s25, 1
      %p153 = por %p151, %p152
      %p154 = scmp.ne.s32.totalorder %s143, %s144
      %p155 = scmp.eq.s32.totalorder %s25, 0
      %p156 = por %p154, %p155
      %p157 = scmp.ne.s32.totalorder %s143, %s144
      %p158 = scmp.eq.s32.totalorder %s26, 1
      %p159 = por %p157, %p158
      %p161 = scmp.ne.s32.totalorder %s144, %s160
      %p162 = scmp.eq.s32.totalorder %s26, 0
      %p163 = por %p161, %p162
      %p164 = scmp.le.s32.totalorder 1, %s20
      %p165 = scmp.lt.s32.totalorder %s20, 3
      %p166 = pnand %p164, %p165
      %p167 = pneg %p166
      // Predicated region
      $region9: #{tpu_custom_call.1} parent=5 // pred_check
        _
      $region10: #{tpu_custom_call.1} parent=5 // pred_check_branch
        %169 = sbr.rel (%p166) target = $region12
      $region11: #{tpu_custom_call.1} parent=5 // pred_region
        %s170 = ssub.s32 %s20, 1
        // Predicated region
        $region13: #{tpu_custom_call.1} parent=11 // pred_check
          %p171 = pneg %p41
        $region14: #{tpu_custom_call.1} parent=11 // pred_check_branch
          %173 = sbr.rel (%p171) target = $region16
        $region15: #{tpu_custom_call.1} parent=11 // pred_region
          %s175 = ssub.s32 16, 16
          %176 = vsyncadd [#allocation6], %s175
          %179 = dma.hbm_to_smem %s0, 16, [#allocation3], [#allocation6]
        $region16: #{tpu_custom_call.1} parent=11 // pred_fallthru
          _
        // Predicated region
        $region17: #{tpu_custom_call.1} parent=11 // pred_check
          %p180 = pneg %p62
        $region18: #{tpu_custom_call.1} parent=11 // pred_check_branch
          %182 = sbr.rel (%p180) target = $region20
        $region19: #{tpu_custom_call.1} parent=11 // pred_region
          _
        $region20: #{tpu_custom_call.1} parent=11 // pred_fallthru
          _
        // Predicated region
        $region21: #{tpu_custom_call.1} parent=11 // pred_check
          %p183 = pneg %p109
        $region22: #{tpu_custom_call.1} parent=11 // pred_check_branch
          %185 = sbr.rel (%p183) target = $region24
        $region23: #{tpu_custom_call.1} parent=11 // pred_region
          %s187 = ssub.s32 512, 512
          %188 = vsyncadd [#allocation9], %s187
          %s189 = sshll.u32 [#allocation8], 4
          %s190 = int_to_ptr.vmem [resolvable:$true] %s189
          %195 = dma.hbm_to_vmem [thread:$0]  %s3, 512, %s190, [#allocation9], 64, 64, 4
        $region24: #{tpu_custom_call.1} parent=11 // pred_fallthru
          _
        // Predicated region
        $region25: #{tpu_custom_call.1} parent=11 // pred_check
          %p196 = pneg %p130
        $region26: #{tpu_custom_call.1} parent=11 // pred_check_branch
          %198 = sbr.rel (%p196) target = $region28
        $region27: #{tpu_custom_call.1} parent=11 // pred_region
          %s200 = ssub.s32 128, 128
          %201 = vsyncadd [#allocation9], %s200
          %s202 = sshll.u32 [#allocation10], 4
          %s203 = int_to_ptr.vmem [resolvable:$true] %s202
          %208 = dma.hbm_to_vmem [thread:$0]  %s4, 128, %s203, [#allocation9], 64, 64, 4
        $region28: #{tpu_custom_call.1} parent=11 // pred_fallthru
          _
      $region12: #{tpu_custom_call.1} parent=5 // pred_fallthru
        _
      %p209 = scmp.lt.s32.totalorder %s20, 2
      // Predicated region
      $region29: #{tpu_custom_call.1} parent=5 // pred_check
        %p210 = pneg %p209
      $region30: #{tpu_custom_call.1} parent=5 // pred_check_branch
        %212 = sbr.rel (%p210) target = $region32
      $region31: #{tpu_custom_call.1} parent=5 // pred_region
        // Predicated region
        $region33: #{tpu_custom_call.1} parent=31 // pred_check
          %p213 = pneg %p82
        $region34: #{tpu_custom_call.1} parent=31 // pred_check_branch
          %215 = sbr.rel (%p213) target = $region36
        $region35: #{tpu_custom_call.1} parent=31 // pred_region
          %s216 = sand.u32 %s72, 1
          %s217 = scalar_lea.sflag [#allocation4], %s216
          %s218 = sand.u32 %s72, 1
          %s219 = smul.addr %s218, 512
          %s220 = scalar_lea.vmem [#allocation7], %s219
          %s222 = ssub.s32 8192, 8192
          %223 = vsyncadd %s217, %s222
          %s224 = smul.addr %s20, 128
          %s225 = smul.addr %s224, 64
          %s226 = scalar_lea.hbm %s2, %s225
          %s227 = sshll.u32 %s220, 4
          %s228 = int_to_ptr.vmem [resolvable:$true] %s227
          %233 = dma.hbm_to_vmem [thread:$0]  %s226, 8192, %s228, %s217, 64, 64, 4
        $region36: #{tpu_custom_call.1} parent=31 // pred_fallthru
          _
      $region32: #{tpu_custom_call.1} parent=5 // pred_fallthru
        _
      %p234 = scmp.le.s32.totalorder 1, %s20
      %p235 = scmp.lt.s32.totalorder %s20, 3
      %p236 = pnand %p234, %p235
      %p237 = pneg %p236
      // Predicated region
      $region37: #{tpu_custom_call.1} parent=5 // pred_check
        _
      $region38: #{tpu_custom_call.1} parent=5 // pred_check_branch
        %239 = sbr.rel (%p236) target = $region40
      $region39: #{tpu_custom_call.1} parent=5 // pred_region
        %s240 = ssub.s32 %s20, 1
        // Predicated region
        $region41: #{tpu_custom_call.1} parent=39 // pred_check
          %p241 = pneg %p41
        $region42: #{tpu_custom_call.1} parent=39 // pred_check_branch
          %243 = sbr.rel (%p241) target = $region44
        $region43: #{tpu_custom_call.1} parent=39 // pred_region
          %244 = dma.done [#allocation6], 16
        $region44: #{tpu_custom_call.1} parent=39 // pred_fallthru
          _
        %s245 = sand.u32 %s75, 1
        %s246 = scalar_lea.sflag [#allocation4], %s245
        %s247 = sand.u32 %s75, 1
        %s248 = smul.addr %s247, 512
        %s249 = scalar_lea.vmem [#allocation7], %s248
        // Predicated region
        $region45: #{tpu_custom_call.1} parent=39 // pred_check
          %p250 = pneg %p88
        $region46: #{tpu_custom_call.1} parent=39 // pred_check_branch
          %252 = sbr.rel (%p250) target = $region48
        $region47: #{tpu_custom_call.1} parent=39 // pred_region
          %253 = dma.done %s246, 8192
        $region48: #{tpu_custom_call.1} parent=39 // pred_fallthru
          _
        // Predicated region
        $region49: #{tpu_custom_call.1} parent=39 // pred_check
          %p254 = pneg %p109
        $region50: #{tpu_custom_call.1} parent=39 // pred_check_branch
          %256 = sbr.rel (%p254) target = $region52
        $region51: #{tpu_custom_call.1} parent=39 // pred_region
          %257 = dma.done [#allocation9], 512
        $region52: #{tpu_custom_call.1} parent=39 // pred_fallthru
          _
        // Predicated region
        $region53: #{tpu_custom_call.1} parent=39 // pred_check
          %p258 = pneg %p130
        $region54: #{tpu_custom_call.1} parent=39 // pred_check_branch
          %260 = sbr.rel (%p258) target = $region56
        $region55: #{tpu_custom_call.1} parent=39 // pred_region
          %261 = dma.done [#allocation9], 128
        $region56: #{tpu_custom_call.1} parent=39 // pred_fallthru
          _
        %262 = sfence
        %p263 = pneg %p41
        %p264 = pneg %p38
        %p265 = pneg %p62
        %p266 = pneg %p59
        %s267 = sand.u32 %s75, 1
        %s268 = scalar_lea.sflag [#allocation4], %s267
        %s269 = sand.u32 %s75, 1
        %s270 = smul.addr %s269, 512
        %s271 = scalar_lea.vmem [#allocation7], %s270
        %p272 = pneg %p88
        %p273 = pneg %p85
        %p274 = pneg %p109
        %p275 = pneg %p106
        %p276 = pneg %p130
        %p277 = pneg %p127
        %p278 = pneg %p156
        %p279 = pneg %p153
        %s280 = sand.u32 %s143, 1
        %s281 = scalar_lea.sflag [#allocation5], %s280
        %s282 = sand.u32 %s143, 1
        %s283 = smul.addr %s282, 64
        %s284 = scalar_lea.vmem [#allocation11], %s283
        %s286 = sld [smem:[#allocation3]]
        %v287 = vld [vmem:[%s249] sm:$0xf]
        %v288 = vld [vmem:[%s249 + $0x4] sm:$0xf]
        %v289 = vunpack.c.l.bf16 %v287
        %v290 = vunpack.c.l.bf16 %v288
        %v291 = vstv %s286
        %v292 = vmul.f32 %v291, %v289
        %v293 = vmul.f32 %v291, %v290
        %s294 = sld [smem:[#allocation3 + $0x1]]
        %s295 = scalar_lea.vmem %s249, 8 [#allocation7]
        %v296 = vld [vmem:[%s295] sm:$0xf]
        %v297 = vld [vmem:[%s295 + $0x4] sm:$0xf]
        %v298 = vunpack.c.l.bf16 %v296
        %v299 = vunpack.c.l.bf16 %v297
        %v300 = vstv %s294
        %v301 = vmul.f32 %v300, %v298
        %v302 = vmul.f32 %v300, %v299
        %v303 = vadd.f32 %v292, %v301
        %v304 = vadd.f32 %v293, %v302
        %s305 = sld [smem:[#allocation3 + $0x2]]
        %s306 = scalar_lea.vmem %s249, 16 [#allocation7]
        %v307 = vld [vmem:[%s306] sm:$0xf]
        %v308 = vld [vmem:[%s306 + $0x4] sm:$0xf]
        %v309 = vunpack.c.l.bf16 %v307
        %v310 = vunpack.c.l.bf16 %v308
        %v311 = vstv %s305
        %v312 = vmul.f32 %v311, %v309
        %v313 = vmul.f32 %v311, %v310
        %v314 = vadd.f32 %v303, %v312
        %v315 = vadd.f32 %v304, %v313
        %s316 = sld [smem:[#allocation3 + $0x3]]
        %s317 = scalar_lea.vmem %s249, 24 [#allocation7]
        %v318 = vld [vmem:[%s317] sm:$0xf]
        %v319 = vld [vmem:[%s317 + $0x4] sm:$0xf]
        %v320 = vunpack.c.l.bf16 %v318
        %v321 = vunpack.c.l.bf16 %v319
        %v322 = vstv %s316
        %v323 = vmul.f32 %v322, %v320
        %v324 = vmul.f32 %v322, %v321
        %v325 = vadd.f32 %v314, %v323
        %v326 = vadd.f32 %v315, %v324
        %s327 = sld [smem:[#allocation3 + $0x4]]
        %s328 = scalar_lea.vmem %s249, 32 [#allocation7]
        %v329 = vld [vmem:[%s328] sm:$0xf]
        %v330 = vld [vmem:[%s328 + $0x4] sm:$0xf]
        %v331 = vunpack.c.l.bf16 %v329
        %v332 = vunpack.c.l.bf16 %v330
        %v333 = vstv %s327
        %v334 = vmul.f32 %v333, %v331
        %v335 = vmul.f32 %v333, %v332
        %v336 = vadd.f32 %v325, %v334
        %v337 = vadd.f32 %v326, %v335
        %s338 = sld [smem:[#allocation3 + $0x5]]
        %s339 = scalar_lea.vmem %s249, 40 [#allocation7]
        %v340 = vld [vmem:[%s339] sm:$0xf]
        %v341 = vld [vmem:[%s339 + $0x4] sm:$0xf]
        %v342 = vunpack.c.l.bf16 %v340
        %v343 = vunpack.c.l.bf16 %v341
        %v344 = vstv %s338
        %v345 = vmul.f32 %v344, %v342
        %v346 = vmul.f32 %v344, %v343
        %v347 = vadd.f32 %v336, %v345
        %v348 = vadd.f32 %v337, %v346
        %s349 = sld [smem:[#allocation3 + $0x6]]
        %s350 = scalar_lea.vmem %s249, 48 [#allocation7]
        %v351 = vld [vmem:[%s350] sm:$0xf]
        %v352 = vld [vmem:[%s350 + $0x4] sm:$0xf]
        %v353 = vunpack.c.l.bf16 %v351
        %v354 = vunpack.c.l.bf16 %v352
        %v355 = vstv %s349
        %v356 = vmul.f32 %v355, %v353
        %v357 = vmul.f32 %v355, %v354
        %v358 = vadd.f32 %v347, %v356
        %v359 = vadd.f32 %v348, %v357
        %s360 = sld [smem:[#allocation3 + $0x7]]
        %s361 = scalar_lea.vmem %s249, 56 [#allocation7]
        %v362 = vld [vmem:[%s361] sm:$0xf]
        %v363 = vld [vmem:[%s361 + $0x4] sm:$0xf]
        %v364 = vunpack.c.l.bf16 %v362
        %v365 = vunpack.c.l.bf16 %v363
        %v366 = vstv %s360
        %v367 = vmul.f32 %v366, %v364
        %v368 = vmul.f32 %v366, %v365
        %v369 = vadd.f32 %v358, %v367
        %v370 = vadd.f32 %v359, %v368
        %s371 = sld [smem:[#allocation3 + $0x8]]
        %s372 = scalar_lea.vmem %s249, 64 [#allocation7]
        %v373 = vld [vmem:[%s372] sm:$0xf]
        %v374 = vld [vmem:[%s372 + $0x4] sm:$0xf]
        %v375 = vunpack.c.l.bf16 %v373
        %v376 = vunpack.c.l.bf16 %v374
        %v377 = vstv %s371
        %v378 = vmul.f32 %v377, %v375
        %v379 = vmul.f32 %v377, %v376
        %v380 = vadd.f32 %v369, %v378
        %v381 = vadd.f32 %v370, %v379
        %s382 = sld [smem:[#allocation3 + $0x9]]
        %s383 = scalar_lea.vmem %s249, 72 [#allocation7]
        %v384 = vld [vmem:[%s383] sm:$0xf]
        %v385 = vld [vmem:[%s383 + $0x4] sm:$0xf]
        %v386 = vunpack.c.l.bf16 %v384
        %v387 = vunpack.c.l.bf16 %v385
        %v388 = vstv %s382
        %v389 = vmul.f32 %v388, %v386
        %v390 = vmul.f32 %v388, %v387
        %v391 = vadd.f32 %v380, %v389
        %v392 = vadd.f32 %v381, %v390
        %s393 = sld [smem:[#allocation3 + $0xa]]
        %s394 = scalar_lea.vmem %s249, 80 [#allocation7]
        %v395 = vld [vmem:[%s394] sm:$0xf]
        %v396 = vld [vmem:[%s394 + $0x4] sm:$0xf]
        %v397 = vunpack.c.l.bf16 %v395
        %v398 = vunpack.c.l.bf16 %v396
        %v399 = vstv %s393
        %v400 = vmul.f32 %v399, %v397
        %v401 = vmul.f32 %v399, %v398
        %v402 = vadd.f32 %v391, %v400
        %v403 = vadd.f32 %v392, %v401
        %s404 = sld [smem:[#allocation3 + $0xb]]
        %s405 = scalar_lea.vmem %s249, 88 [#allocation7]
        %v406 = vld [vmem:[%s405] sm:$0xf]
        %v407 = vld [vmem:[%s405 + $0x4] sm:$0xf]
        %v408 = vunpack.c.l.bf16 %v406
        %v409 = vunpack.c.l.bf16 %v407
        %v410 = vstv %s404
        %v411 = vmul.f32 %v410, %v408
        %v412 = vmul.f32 %v410, %v409
        %v413 = vadd.f32 %v402, %v411
        %v414 = vadd.f32 %v403, %v412
        %s415 = sld [smem:[#allocation3 + $0xc]]
        %s416 = scalar_lea.vmem %s249, 96 [#allocation7]
        %v417 = vld [vmem:[%s416] sm:$0xf]
        %v418 = vld [vmem:[%s416 + $0x4] sm:$0xf]
        %v419 = vunpack.c.l.bf16 %v417
        %v420 = vunpack.c.l.bf16 %v418
        %v421 = vstv %s415
        %v422 = vmul.f32 %v421, %v419
        %v423 = vmul.f32 %v421, %v420
        %v424 = vadd.f32 %v413, %v422
        %v425 = vadd.f32 %v414, %v423
        %s426 = sld [smem:[#allocation3 + $0xd]]
        %s427 = scalar_lea.vmem %s249, 104 [#allocation7]
        %v428 = vld [vmem:[%s427] sm:$0xf]
        %v429 = vld [vmem:[%s427 + $0x4] sm:$0xf]
        %v430 = vunpack.c.l.bf16 %v428
        %v431 = vunpack.c.l.bf16 %v429
        %v432 = vstv %s426
        %v433 = vmul.f32 %v432, %v430
        %v434 = vmul.f32 %v432, %v431
        %v435 = vadd.f32 %v424, %v433
        %v436 = vadd.f32 %v425, %v434
        %s437 = sld [smem:[#allocation3 + $0xe]]
        %s438 = scalar_lea.vmem %s249, 112 [#allocation7]
        %v439 = vld [vmem:[%s438] sm:$0xf]
        %v440 = vld [vmem:[%s438 + $0x4] sm:$0xf]
        %v441 = vunpack.c.l.bf16 %v439
        %v442 = vunpack.c.l.bf16 %v440
        %v443 = vstv %s437
        %v444 = vmul.f32 %v443, %v441
        %v445 = vmul.f32 %v443, %v442
        %v446 = vadd.f32 %v435, %v444
        %v447 = vadd.f32 %v436, %v445
        %s448 = sld [smem:[#allocation3 + $0xf]]
        %s449 = scalar_lea.vmem %s249, 120 [#allocation7]
        %v450 = vld [vmem:[%s449] sm:$0xf]
        %v451 = vld [vmem:[%s449 + $0x4] sm:$0xf]
        %v452 = vunpack.c.l.bf16 %v450
        %v453 = vunpack.c.l.bf16 %v451
        %v454 = vstv %s448
        %v455 = vmul.f32 %v454, %v452
        %v456 = vmul.f32 %v454, %v453
        %v457 = vadd.f32 %v446, %v455
        %v458 = vadd.f32 %v447, %v456
        %s459 = sld [smem:[#allocation3 + $0x10]]
        %s460 = scalar_lea.vmem %s249, 128 [#allocation7]
        %v461 = vld [vmem:[%s460] sm:$0xf]
        %v462 = vld [vmem:[%s460 + $0x4] sm:$0xf]
        %v463 = vunpack.c.l.bf16 %v461
        %v464 = vunpack.c.l.bf16 %v462
        %v465 = vstv %s459
        %v466 = vmul.f32 %v465, %v463
        %v467 = vmul.f32 %v465, %v464
        %v468 = vadd.f32 %v457, %v466
        %v469 = vadd.f32 %v458, %v467
        %s470 = sld [smem:[#allocation3 + $0x11]]
        %s471 = scalar_lea.vmem %s249, 136 [#allocation7]
        %v472 = vld [vmem:[%s471] sm:$0xf]
        %v473 = vld [vmem:[%s471 + $0x4] sm:$0xf]
        %v474 = vunpack.c.l.bf16 %v472
        %v475 = vunpack.c.l.bf16 %v473
        %v476 = vstv %s470
        %v477 = vmul.f32 %v476, %v474
        %v478 = vmul.f32 %v476, %v475
        %v479 = vadd.f32 %v468, %v477
        %v480 = vadd.f32 %v469, %v478
        %s481 = sld [smem:[#allocation3 + $0x12]]
        %s482 = scalar_lea.vmem %s249, 144 [#allocation7]
        %v483 = vld [vmem:[%s482] sm:$0xf]
        %v484 = vld [vmem:[%s482 + $0x4] sm:$0xf]
        %v485 = vunpack.c.l.bf16 %v483
        %v486 = vunpack.c.l.bf16 %v484
        %v487 = vstv %s481
        %v488 = vmul.f32 %v487, %v485
        %v489 = vmul.f32 %v487, %v486
        %v490 = vadd.f32 %v479, %v488
        %v491 = vadd.f32 %v480, %v489
        %s492 = sld [smem:[#allocation3 + $0x13]]
        %s493 = scalar_lea.vmem %s249, 152 [#allocation7]
        %v494 = vld [vmem:[%s493] sm:$0xf]
        %v495 = vld [vmem:[%s493 + $0x4] sm:$0xf]
        %v496 = vunpack.c.l.bf16 %v494
        %v497 = vunpack.c.l.bf16 %v495
        %v498 = vstv %s492
        %v499 = vmul.f32 %v498, %v496
        %v500 = vmul.f32 %v498, %v497
        %v501 = vadd.f32 %v490, %v499
        %v502 = vadd.f32 %v491, %v500
        %s503 = sld [smem:[#allocation3 + $0x14]]
        %s504 = scalar_lea.vmem %s249, 160 [#allocation7]
        %v505 = vld [vmem:[%s504] sm:$0xf]
        %v506 = vld [vmem:[%s504 + $0x4] sm:$0xf]
        %v507 = vunpack.c.l.bf16 %v505
        %v508 = vunpack.c.l.bf16 %v506
        %v509 = vstv %s503
        %v510 = vmul.f32 %v509, %v507
        %v511 = vmul.f32 %v509, %v508
        %v512 = vadd.f32 %v501, %v510
        %v513 = vadd.f32 %v502, %v511
        %s514 = sld [smem:[#allocation3 + $0x15]]
        %s515 = scalar_lea.vmem %s249, 168 [#allocation7]
        %v516 = vld [vmem:[%s515] sm:$0xf]
        %v517 = vld [vmem:[%s515 + $0x4] sm:$0xf]
        %v518 = vunpack.c.l.bf16 %v516
        %v519 = vunpack.c.l.bf16 %v517
        %v520 = vstv %s514
        %v521 = vmul.f32 %v520, %v518
        %v522 = vmul.f32 %v520, %v519
        %v523 = vadd.f32 %v512, %v521
        %v524 = vadd.f32 %v513, %v522
        %s525 = sld [smem:[#allocation3 + $0x16]]
        %s526 = scalar_lea.vmem %s249, 176 [#allocation7]
        %v527 = vld [vmem:[%s526] sm:$0xf]
        %v528 = vld [vmem:[%s526 + $0x4] sm:$0xf]
        %v529 = vunpack.c.l.bf16 %v527
        %v530 = vunpack.c.l.bf16 %v528
        %v531 = vstv %s525
        %v532 = vmul.f32 %v531, %v529
        %v533 = vmul.f32 %v531, %v530
        %v534 = vadd.f32 %v523, %v532
        %v535 = vadd.f32 %v524, %v533
        %s536 = sld [smem:[#allocation3 + $0x17]]
        %s537 = scalar_lea.vmem %s249, 184 [#allocation7]
        %v538 = vld [vmem:[%s537] sm:$0xf]
        %v539 = vld [vmem:[%s537 + $0x4] sm:$0xf]
        %v540 = vunpack.c.l.bf16 %v538
        %v541 = vunpack.c.l.bf16 %v539
        %v542 = vstv %s536
        %v543 = vmul.f32 %v542, %v540
        %v544 = vmul.f32 %v542, %v541
        %v545 = vadd.f32 %v534, %v543
        %v546 = vadd.f32 %v535, %v544
        %s547 = sld [smem:[#allocation3 + $0x18]]
        %s548 = scalar_lea.vmem %s249, 192 [#allocation7]
        %v549 = vld [vmem:[%s548] sm:$0xf]
        %v550 = vld [vmem:[%s548 + $0x4] sm:$0xf]
        %v551 = vunpack.c.l.bf16 %v549
        %v552 = vunpack.c.l.bf16 %v550
        %v553 = vstv %s547
        %v554 = vmul.f32 %v553, %v551
        %v555 = vmul.f32 %v553, %v552
        %v556 = vadd.f32 %v545, %v554
        %v557 = vadd.f32 %v546, %v555
        %s558 = sld [smem:[#allocation3 + $0x19]]
        %s559 = scalar_lea.vmem %s249, 200 [#allocation7]
        %v560 = vld [vmem:[%s559] sm:$0xf]
        %v561 = vld [vmem:[%s559 + $0x4] sm:$0xf]
        %v562 = vunpack.c.l.bf16 %v560
        %v563 = vunpack.c.l.bf16 %v561
        %v564 = vstv %s558
        %v565 = vmul.f32 %v564, %v562
        %v566 = vmul.f32 %v564, %v563
        %v567 = vadd.f32 %v556, %v565
        %v568 = vadd.f32 %v557, %v566
        %s569 = sld [smem:[#allocation3 + $0x1a]]
        %s570 = scalar_lea.vmem %s249, 208 [#allocation7]
        %v571 = vld [vmem:[%s570] sm:$0xf]
        %v572 = vld [vmem:[%s570 + $0x4] sm:$0xf]
        %v573 = vunpack.c.l.bf16 %v571
        %v574 = vunpack.c.l.bf16 %v572
        %v575 = vstv %s569
        %v576 = vmul.f32 %v575, %v573
        %v577 = vmul.f32 %v575, %v574
        %v578 = vadd.f32 %v567, %v576
        %v579 = vadd.f32 %v568, %v577
        %s580 = sld [smem:[#allocation3 + $0x1b]]
        %s581 = scalar_lea.vmem %s249, 216 [#allocation7]
        %v582 = vld [vmem:[%s581] sm:$0xf]
        %v583 = vld [vmem:[%s581 + $0x4] sm:$0xf]
        %v584 = vunpack.c.l.bf16 %v582
        %v585 = vunpack.c.l.bf16 %v583
        %v586 = vstv %s580
        %v587 = vmul.f32 %v586, %v584
        %v588 = vmul.f32 %v586, %v585
        %v589 = vadd.f32 %v578, %v587
        %v590 = vadd.f32 %v579, %v588
        %s591 = sld [smem:[#allocation3 + $0x1c]]
        %s592 = scalar_lea.vmem %s249, 224 [#allocation7]
        %v593 = vld [vmem:[%s592] sm:$0xf]
        %v594 = vld [vmem:[%s592 + $0x4] sm:$0xf]
        %v595 = vunpack.c.l.bf16 %v593
        %v596 = vunpack.c.l.bf16 %v594
        %v597 = vstv %s591
        %v598 = vmul.f32 %v597, %v595
        %v599 = vmul.f32 %v597, %v596
        %v600 = vadd.f32 %v589, %v598
        %v601 = vadd.f32 %v590, %v599
        %s602 = sld [smem:[#allocation3 + $0x1d]]
        %s603 = scalar_lea.vmem %s249, 232 [#allocation7]
        %v604 = vld [vmem:[%s603] sm:$0xf]
        %v605 = vld [vmem:[%s603 + $0x4] sm:$0xf]
        %v606 = vunpack.c.l.bf16 %v604
        %v607 = vunpack.c.l.bf16 %v605
        %v608 = vstv %s602
        %v609 = vmul.f32 %v608, %v606
        %v610 = vmul.f32 %v608, %v607
        %v611 = vadd.f32 %v600, %v609
        %v612 = vadd.f32 %v601, %v610
        %s613 = sld [smem:[#allocation3 + $0x1e]]
        %s614 = scalar_lea.vmem %s249, 240 [#allocation7]
        %v615 = vld [vmem:[%s614] sm:$0xf]
        %v616 = vld [vmem:[%s614 + $0x4] sm:$0xf]
        %v617 = vunpack.c.l.bf16 %v615
        %v618 = vunpack.c.l.bf16 %v616
        %v619 = vstv %s613
        %v620 = vmul.f32 %v619, %v617
        %v621 = vmul.f32 %v619, %v618
        %v622 = vadd.f32 %v611, %v620
        %v623 = vadd.f32 %v612, %v621
        %s624 = sld [smem:[#allocation3 + $0x1f]]
        %s625 = scalar_lea.vmem %s249, 248 [#allocation7]
        %v626 = vld [vmem:[%s625] sm:$0xf]
        %v627 = vld [vmem:[%s625 + $0x4] sm:$0xf]
        %v628 = vunpack.c.l.bf16 %v626
        %v629 = vunpack.c.l.bf16 %v627
        %v630 = vstv %s624
        %v631 = vmul.f32 %v630, %v628
        %v632 = vmul.f32 %v630, %v629
        %v633 = vadd.f32 %v622, %v631
        %v634 = vadd.f32 %v623, %v632
        %s635 = sld [smem:[#allocation3 + $0x20]]
        %s636 = scalar_lea.vmem %s249, 256 [#allocation7]
        %v637 = vld [vmem:[%s636] sm:$0xf]
        %v638 = vld [vmem:[%s636 + $0x4] sm:$0xf]
        %v639 = vunpack.c.l.bf16 %v637
        %v640 = vunpack.c.l.bf16 %v638
        %v641 = vstv %s635
        %v642 = vmul.f32 %v641, %v639
        %v643 = vmul.f32 %v641, %v640
        %v644 = vadd.f32 %v633, %v642
        %v645 = vadd.f32 %v634, %v643
        %s646 = sld [smem:[#allocation3 + $0x21]]
        %s647 = scalar_lea.vmem %s249, 264 [#allocation7]
        %v648 = vld [vmem:[%s647] sm:$0xf]
        %v649 = vld [vmem:[%s647 + $0x4] sm:$0xf]
        %v650 = vunpack.c.l.bf16 %v648
        %v651 = vunpack.c.l.bf16 %v649
        %v652 = vstv %s646
        %v653 = vmul.f32 %v652, %v650
        %v654 = vmul.f32 %v652, %v651
        %v655 = vadd.f32 %v644, %v653
        %v656 = vadd.f32 %v645, %v654
        %s657 = sld [smem:[#allocation3 + $0x22]]
        %s658 = scalar_lea.vmem %s249, 272 [#allocation7]
        %v659 = vld [vmem:[%s658] sm:$0xf]
        %v660 = vld [vmem:[%s658 + $0x4] sm:$0xf]
        %v661 = vunpack.c.l.bf16 %v659
        %v662 = vunpack.c.l.bf16 %v660
        %v663 = vstv %s657
        %v664 = vmul.f32 %v663, %v661
        %v665 = vmul.f32 %v663, %v662
        %v666 = vadd.f32 %v655, %v664
        %v667 = vadd.f32 %v656, %v665
        %s668 = sld [smem:[#allocation3 + $0x23]]
        %s669 = scalar_lea.vmem %s249, 280 [#allocation7]
        %v670 = vld [vmem:[%s669] sm:$0xf]
        %v671 = vld [vmem:[%s669 + $0x4] sm:$0xf]
        %v672 = vunpack.c.l.bf16 %v670
        %v673 = vunpack.c.l.bf16 %v671
        %v674 = vstv %s668
        %v675 = vmul.f32 %v674, %v672
        %v676 = vmul.f32 %v674, %v673
        %v677 = vadd.f32 %v666, %v675
        %v678 = vadd.f32 %v667, %v676
        %s679 = sld [smem:[#allocation3 + $0x24]]
        %s680 = scalar_lea.vmem %s249, 288 [#allocation7]
        %v681 = vld [vmem:[%s680] sm:$0xf]
        %v682 = vld [vmem:[%s680 + $0x4] sm:$0xf]
        %v683 = vunpack.c.l.bf16 %v681
        %v684 = vunpack.c.l.bf16 %v682
        %v685 = vstv %s679
        %v686 = vmul.f32 %v685, %v683
        %v687 = vmul.f32 %v685, %v684
        %v688 = vadd.f32 %v677, %v686
        %v689 = vadd.f32 %v678, %v687
        %s690 = sld [smem:[#allocation3 + $0x25]]
        %s691 = scalar_lea.vmem %s249, 296 [#allocation7]
        %v692 = vld [vmem:[%s691] sm:$0xf]
        %v693 = vld [vmem:[%s691 + $0x4] sm:$0xf]
        %v694 = vunpack.c.l.bf16 %v692
        %v695 = vunpack.c.l.bf16 %v693
        %v696 = vstv %s690
        %v697 = vmul.f32 %v696, %v694
        %v698 = vmul.f32 %v696, %v695
        %v699 = vadd.f32 %v688, %v697
        %v700 = vadd.f32 %v689, %v698
        %s701 = sld [smem:[#allocation3 + $0x26]]
        %s702 = scalar_lea.vmem %s249, 304 [#allocation7]
        %v703 = vld [vmem:[%s702] sm:$0xf]
        %v704 = vld [vmem:[%s702 + $0x4] sm:$0xf]
        %v705 = vunpack.c.l.bf16 %v703
        %v706 = vunpack.c.l.bf16 %v704
        %v707 = vstv %s701
        %v708 = vmul.f32 %v707, %v705
        %v709 = vmul.f32 %v707, %v706
        %v710 = vadd.f32 %v699, %v708
        %v711 = vadd.f32 %v700, %v709
        %s712 = sld [smem:[#allocation3 + $0x27]]
        %s713 = scalar_lea.vmem %s249, 312 [#allocation7]
        %v714 = vld [vmem:[%s713] sm:$0xf]
        %v715 = vld [vmem:[%s713 + $0x4] sm:$0xf]
        %v716 = vunpack.c.l.bf16 %v714
        %v717 = vunpack.c.l.bf16 %v715
        %v718 = vstv %s712
        %v719 = vmul.f32 %v718, %v716
        %v720 = vmul.f32 %v718, %v717
        %v721 = vadd.f32 %v710, %v719
        %v722 = vadd.f32 %v711, %v720
        %s723 = sld [smem:[#allocation3 + $0x28]]
        %s724 = scalar_lea.vmem %s249, 320 [#allocation7]
        %v725 = vld [vmem:[%s724] sm:$0xf]
        %v726 = vld [vmem:[%s724 + $0x4] sm:$0xf]
        %v727 = vunpack.c.l.bf16 %v725
        %v728 = vunpack.c.l.bf16 %v726
        %v729 = vstv %s723
        %v730 = vmul.f32 %v729, %v727
        %v731 = vmul.f32 %v729, %v728
        %v732 = vadd.f32 %v721, %v730
        %v733 = vadd.f32 %v722, %v731
        %s734 = sld [smem:[#allocation3 + $0x29]]
        %s735 = scalar_lea.vmem %s249, 328 [#allocation7]
        %v736 = vld [vmem:[%s735] sm:$0xf]
        %v737 = vld [vmem:[%s735 + $0x4] sm:$0xf]
        %v738 = vunpack.c.l.bf16 %v736
        %v739 = vunpack.c.l.bf16 %v737
        %v740 = vstv %s734
        %v741 = vmul.f32 %v740, %v738
        %v742 = vmul.f32 %v740, %v739
        %v743 = vadd.f32 %v732, %v741
        %v744 = vadd.f32 %v733, %v742
        %s745 = sld [smem:[#allocation3 + $0x2a]]
        %s746 = scalar_lea.vmem %s249, 336 [#allocation7]
        %v747 = vld [vmem:[%s746] sm:$0xf]
        %v748 = vld [vmem:[%s746 + $0x4] sm:$0xf]
        %v749 = vunpack.c.l.bf16 %v747
        %v750 = vunpack.c.l.bf16 %v748
        %v751 = vstv %s745
        %v752 = vmul.f32 %v751, %v749
        %v753 = vmul.f32 %v751, %v750
        %v754 = vadd.f32 %v743, %v752
        %v755 = vadd.f32 %v744, %v753
        %s756 = sld [smem:[#allocation3 + $0x2b]]
        %s757 = scalar_lea.vmem %s249, 344 [#allocation7]
        %v758 = vld [vmem:[%s757] sm:$0xf]
        %v759 = vld [vmem:[%s757 + $0x4] sm:$0xf]
        %v760 = vunpack.c.l.bf16 %v758
        %v761 = vunpack.c.l.bf16 %v759
        %v762 = vstv %s756
        %v763 = vmul.f32 %v762, %v760
        %v764 = vmul.f32 %v762, %v761
        %v765 = vadd.f32 %v754, %v763
        %v766 = vadd.f32 %v755, %v764
        %s767 = sld [smem:[#allocation3 + $0x2c]]
        %s768 = scalar_lea.vmem %s249, 352 [#allocation7]
        %v769 = vld [vmem:[%s768] sm:$0xf]
        %v770 = vld [vmem:[%s768 + $0x4] sm:$0xf]
        %v771 = vunpack.c.l.bf16 %v769
        %v772 = vunpack.c.l.bf16 %v770
        %v773 = vstv %s767
        %v774 = vmul.f32 %v773, %v771
        %v775 = vmul.f32 %v773, %v772
        %v776 = vadd.f32 %v765, %v774
        %v777 = vadd.f32 %v766, %v775
        %s778 = sld [smem:[#allocation3 + $0x2d]]
        %s779 = scalar_lea.vmem %s249, 360 [#allocation7]
        %v780 = vld [vmem:[%s779] sm:$0xf]
        %v781 = vld [vmem:[%s779 + $0x4] sm:$0xf]
        %v782 = vunpack.c.l.bf16 %v780
        %v783 = vunpack.c.l.bf16 %v781
        %v784 = vstv %s778
        %v785 = vmul.f32 %v784, %v782
        %v786 = vmul.f32 %v784, %v783
        %v787 = vadd.f32 %v776, %v785
        %v788 = vadd.f32 %v777, %v786
        %s789 = sld [smem:[#allocation3 + $0x2e]]
        %s790 = scalar_lea.vmem %s249, 368 [#allocation7]
        %v791 = vld [vmem:[%s790] sm:$0xf]
        %v792 = vld [vmem:[%s790 + $0x4] sm:$0xf]
        %v793 = vunpack.c.l.bf16 %v791
        %v794 = vunpack.c.l.bf16 %v792
        %v795 = vstv %s789
        %v796 = vmul.f32 %v795, %v793
        %v797 = vmul.f32 %v795, %v794
        %v798 = vadd.f32 %v787, %v796
        %v799 = vadd.f32 %v788, %v797
        %s800 = sld [smem:[#allocation3 + $0x2f]]
        %s801 = scalar_lea.vmem %s249, 376 [#allocation7]
        %v802 = vld [vmem:[%s801] sm:$0xf]
        %v803 = vld [vmem:[%s801 + $0x4] sm:$0xf]
        %v804 = vunpack.c.l.bf16 %v802
        %v805 = vunpack.c.l.bf16 %v803
        %v806 = vstv %s800
        %v807 = vmul.f32 %v806, %v804
        %v808 = vmul.f32 %v806, %v805
        %v809 = vadd.f32 %v798, %v807
        %v810 = vadd.f32 %v799, %v808
        %s811 = sld [smem:[#allocation3 + $0x30]]
        %s812 = scalar_lea.vmem %s249, 384 [#allocation7]
        %v813 = vld [vmem:[%s812] sm:$0xf]
        %v814 = vld [vmem:[%s812 + $0x4] sm:$0xf]
        %v815 = vunpack.c.l.bf16 %v813
        %v816 = vunpack.c.l.bf16 %v814
        %v817 = vstv %s811
        %v818 = vmul.f32 %v817, %v815
        %v819 = vmul.f32 %v817, %v816
        %v820 = vadd.f32 %v809, %v818
        %v821 = vadd.f32 %v810, %v819
        %s822 = sld [smem:[#allocation3 + $0x31]]
        %s823 = scalar_lea.vmem %s249, 392 [#allocation7]
        %v824 = vld [vmem:[%s823] sm:$0xf]
        %v825 = vld [vmem:[%s823 + $0x4] sm:$0xf]
        %v826 = vunpack.c.l.bf16 %v824
        %v827 = vunpack.c.l.bf16 %v825
        %v828 = vstv %s822
        %v829 = vmul.f32 %v828, %v826
        %v830 = vmul.f32 %v828, %v827
        %v831 = vadd.f32 %v820, %v829
        %v832 = vadd.f32 %v821, %v830
        %s833 = sld [smem:[#allocation3 + $0x32]]
        %s834 = scalar_lea.vmem %s249, 400 [#allocation7]
        %v835 = vld [vmem:[%s834] sm:$0xf]
        %v836 = vld [vmem:[%s834 + $0x4] sm:$0xf]
        %v837 = vunpack.c.l.bf16 %v835
        %v838 = vunpack.c.l.bf16 %v836
        %v839 = vstv %s833
        %v840 = vmul.f32 %v839, %v837
        %v841 = vmul.f32 %v839, %v838
        %v842 = vadd.f32 %v831, %v840
        %v843 = vadd.f32 %v832, %v841
        %s844 = sld [smem:[#allocation3 + $0x33]]
        %s845 = scalar_lea.vmem %s249, 408 [#allocation7]
        %v846 = vld [vmem:[%s845] sm:$0xf]
        %v847 = vld [vmem:[%s845 + $0x4] sm:$0xf]
        %v848 = vunpack.c.l.bf16 %v846
        %v849 = vunpack.c.l.bf16 %v847
        %v850 = vstv %s844
        %v851 = vmul.f32 %v850, %v848
        %v852 = vmul.f32 %v850, %v849
        %v853 = vadd.f32 %v842, %v851
        %v854 = vadd.f32 %v843, %v852
        %s855 = sld [smem:[#allocation3 + $0x34]]
        %s856 = scalar_lea.vmem %s249, 416 [#allocation7]
        %v857 = vld [vmem:[%s856] sm:$0xf]
        %v858 = vld [vmem:[%s856 + $0x4] sm:$0xf]
        %v859 = vunpack.c.l.bf16 %v857
        %v860 = vunpack.c.l.bf16 %v858
        %v861 = vstv %s855
        %v862 = vmul.f32 %v861, %v859
        %v863 = vmul.f32 %v861, %v860
        %v864 = vadd.f32 %v853, %v862
        %v865 = vadd.f32 %v854, %v863
        %s866 = sld [smem:[#allocation3 + $0x35]]
        %s867 = scalar_lea.vmem %s249, 424 [#allocation7]
        %v868 = vld [vmem:[%s867] sm:$0xf]
        %v869 = vld [vmem:[%s867 + $0x4] sm:$0xf]
        %v870 = vunpack.c.l.bf16 %v868
        %v871 = vunpack.c.l.bf16 %v869
        %v872 = vstv %s866
        %v873 = vmul.f32 %v872, %v870
        %v874 = vmul.f32 %v872, %v871
        %v875 = vadd.f32 %v864, %v873
        %v876 = vadd.f32 %v865, %v874
        %s877 = sld [smem:[#allocation3 + $0x36]]
        %s878 = scalar_lea.vmem %s249, 432 [#allocation7]
        %v879 = vld [vmem:[%s878] sm:$0xf]
        %v880 = vld [vmem:[%s878 + $0x4] sm:$0xf]
        %v881 = vunpack.c.l.bf16 %v879
        %v882 = vunpack.c.l.bf16 %v880
        %v883 = vstv %s877
        %v884 = vmul.f32 %v883, %v881
        %v885 = vmul.f32 %v883, %v882
        %v886 = vadd.f32 %v875, %v884
        %v887 = vadd.f32 %v876, %v885
        %s888 = sld [smem:[#allocation3 + $0x37]]
        %s889 = scalar_lea.vmem %s249, 440 [#allocation7]
        %v890 = vld [vmem:[%s889] sm:$0xf]
        %v891 = vld [vmem:[%s889 + $0x4] sm:$0xf]
        %v892 = vunpack.c.l.bf16 %v890
        %v893 = vunpack.c.l.bf16 %v891
        %v894 = vstv %s888
        %v895 = vmul.f32 %v894, %v892
        %v896 = vmul.f32 %v894, %v893
        %v897 = vadd.f32 %v886, %v895
        %v898 = vadd.f32 %v887, %v896
        %s899 = sld [smem:[#allocation3 + $0x38]]
        %s900 = scalar_lea.vmem %s249, 448 [#allocation7]
        %v901 = vld [vmem:[%s900] sm:$0xf]
        %v902 = vld [vmem:[%s900 + $0x4] sm:$0xf]
        %v903 = vunpack.c.l.bf16 %v901
        %v904 = vunpack.c.l.bf16 %v902
        %v905 = vstv %s899
        %v906 = vmul.f32 %v905, %v903
        %v907 = vmul.f32 %v905, %v904
        %v908 = vadd.f32 %v897, %v906
        %v909 = vadd.f32 %v898, %v907
        %s910 = sld [smem:[#allocation3 + $0x39]]
        %s911 = scalar_lea.vmem %s249, 456 [#allocation7]
        %v912 = vld [vmem:[%s911] sm:$0xf]
        %v913 = vld [vmem:[%s911 + $0x4] sm:$0xf]
        %v914 = vunpack.c.l.bf16 %v912
        %v915 = vunpack.c.l.bf16 %v913
        %v916 = vstv %s910
        %v917 = vmul.f32 %v916, %v914
        %v918 = vmul.f32 %v916, %v915
        %v919 = vadd.f32 %v908, %v917
        %v920 = vadd.f32 %v909, %v918
        %s921 = sld [smem:[#allocation3 + $0x3a]]
        %s922 = scalar_lea.vmem %s249, 464 [#allocation7]
        %v923 = vld [vmem:[%s922] sm:$0xf]
        %v924 = vld [vmem:[%s922 + $0x4] sm:$0xf]
        %v925 = vunpack.c.l.bf16 %v923
        %v926 = vunpack.c.l.bf16 %v924
        %v927 = vstv %s921
        %v928 = vmul.f32 %v927, %v925
        %v929 = vmul.f32 %v927, %v926
        %v930 = vadd.f32 %v919, %v928
        %v931 = vadd.f32 %v920, %v929
        %s932 = sld [smem:[#allocation3 + $0x3b]]
        %s933 = scalar_lea.vmem %s249, 472 [#allocation7]
        %v934 = vld [vmem:[%s933] sm:$0xf]
        %v935 = vld [vmem:[%s933 + $0x4] sm:$0xf]
        %v936 = vunpack.c.l.bf16 %v934
        %v937 = vunpack.c.l.bf16 %v935
        %v938 = vstv %s932
        %v939 = vmul.f32 %v938, %v936
        %v940 = vmul.f32 %v938, %v937
        %v941 = vadd.f32 %v930, %v939
        %v942 = vadd.f32 %v931, %v940
        %s943 = sld [smem:[#allocation3 + $0x3c]]
        %s944 = scalar_lea.vmem %s249, 480 [#allocation7]
        %v945 = vld [vmem:[%s944] sm:$0xf]
        %v946 = vld [vmem:[%s944 + $0x4] sm:$0xf]
        %v947 = vunpack.c.l.bf16 %v945
        %v948 = vunpack.c.l.bf16 %v946
        %v949 = vstv %s943
        %v950 = vmul.f32 %v949, %v947
        %v951 = vmul.f32 %v949, %v948
        %v952 = vadd.f32 %v941, %v950
        %v953 = vadd.f32 %v942, %v951
        %s954 = sld [smem:[#allocation3 + $0x3d]]
        %s955 = scalar_lea.vmem %s249, 488 [#allocation7]
        %v956 = vld [vmem:[%s955] sm:$0xf]
        %v957 = vld [vmem:[%s955 + $0x4] sm:$0xf]
        %v958 = vunpack.c.l.bf16 %v956
        %v959 = vunpack.c.l.bf16 %v957
        %v960 = vstv %s954
        %v961 = vmul.f32 %v960, %v958
        %v962 = vmul.f32 %v960, %v959
        %v963 = vadd.f32 %v952, %v961
        %v964 = vadd.f32 %v953, %v962
        %s965 = sld [smem:[#allocation3 + $0x3e]]
        %s966 = scalar_lea.vmem %s249, 496 [#allocation7]
        %v967 = vld [vmem:[%s966] sm:$0xf]
        %v968 = vld [vmem:[%s966 + $0x4] sm:$0xf]
        %v969 = vunpack.c.l.bf16 %v967
        %v970 = vunpack.c.l.bf16 %v968
        %v971 = vstv %s965
        %v972 = vmul.f32 %v971, %v969
        %v973 = vmul.f32 %v971, %v970
        %v974 = vadd.f32 %v963, %v972
        %v975 = vadd.f32 %v964, %v973
        %s976 = sld [smem:[#allocation3 + $0x3f]]
        %s977 = scalar_lea.vmem %s249, 504 [#allocation7]
        %v978 = vld [vmem:[%s977] sm:$0xf]
        %v979 = vld [vmem:[%s977 + $0x4] sm:$0xf]
        %v980 = vunpack.c.l.bf16 %v978
        %v981 = vunpack.c.l.bf16 %v979
        %v982 = vstv %s976
        %v983 = vmul.f32 %v982, %v980
        %v984 = vmul.f32 %v982, %v981
        %v985 = vadd.f32 %v974, %v983
        %v986 = vadd.f32 %v975, %v984
        %v987 = vld [vmem:[#allocation8] sm:$0xf]
        %v988 = vld [vmem:[#allocation8 + $0x4] sm:$0xf]
        %v989 = vld [vmem:[#allocation8 + $0x8] sm:$0xf]
        %v990 = vld [vmem:[#allocation8 + $0xc] sm:$0xf]
        %v991 = vld [vmem:[#allocation8 + $0x10] sm:$0xf]
        %v992 = vld [vmem:[#allocation8 + $0x14] sm:$0xf]
        %v993 = vld [vmem:[#allocation8 + $0x18] sm:$0xf]
        %v994 = vld [vmem:[#allocation8 + $0x1c] sm:$0xf]
        %v995 = vpack.c.bf16 %v986, %v985
        %v1004 = vunpack.c.l.b16 %v987
        %v1005 = vunpack.c.l.b16 %v988
        %v1006 = vunpack.c.l.b16 %v989
        %v1007 = vunpack.c.l.b16 %v990
        %v1008 = vunpack.c.l.b16 %v991
        %v1009 = vunpack.c.l.b16 %v992
        %v1010 = vunpack.c.l.b16 %v993
        %v1011 = vunpack.c.l.b16 %v994
        %v1012 = vpack.c.b16 %v1005, %v1004
        %v1013 = vpack.c.b16 %v1007, %v1006
        %v1014 = vpack.c.b16 %v1009, %v1008
        %v1015 = vpack.c.b16 %v1011, %v1010
        %vm1016 = vcmask 130048
        %v1018 = vsel %vm1016, %v1012, 0
        %v1021 = vsel %vm1016, %v1013, 0
        %v1024 = vsel %vm1016, %v1014, 0
        %v1027 = vsel %vm1016, %v1015, 0
        %1029 = vmatprep.subr.bf16.mxu0 0
        %1030 = vmatpush1.bf16.msra.mxu0 %v995
        %1031 = vmatprep.subr.bf16.mxu0 0
        %1032 = vmatpush1.bf16.msra.mxu0 0
        %1033 = vmatprep.subr.bf16.mxu0 0
        %1034 = vmatpush1.bf16.msra.mxu0 0
        %1035 = vmatprep.subr.bf16.mxu0 0
        %1036 = vmatpush1.bf16.msra.mxu0 0
        %1037 = vmatprep.subr.bf16.mxu0 0
        %1038 = vmatpush1.bf16.msra.mxu0 0
        %1039 = vmatprep.subr.bf16.mxu0 0
        %1040 = vmatpush1.bf16.msra.mxu0 0
        %1041 = vmatprep.subr.bf16.mxu0 0
        %1042 = vmatpush1.bf16.msra.mxu0 0
        %1043 = vmatprep.subr.bf16.mxu0 0
        %1044 = vmatpush1.bf16.msra.mxu0 0
        %1045 = vmatprep.subr.bf16.mxu0 0
        %1046 = vmatpush1.bf16.msra.mxu0 0
        %1047 = vmatprep.subr.bf16.mxu0 0
        %1048 = vmatpush1.bf16.msra.mxu0 0
        %1049 = vmatprep.subr.bf16.mxu0 0
        %1050 = vmatpush1.bf16.msra.mxu0 0
        %1051 = vmatprep.subr.bf16.mxu0 0
        %1052 = vmatpush1.bf16.msra.mxu0 0
        %1053 = vmatprep.subr.bf16.mxu0 0
        %1054 = vmatpush1.bf16.msra.mxu0 0
        %1055 = vmatprep.subr.bf16.mxu0 0
        %1056 = vmatpush1.bf16.msra.mxu0 0
        %1057 = vmatprep.subr.bf16.mxu0 0
        %1058 = vmatpush1.bf16.msra.mxu0 0
        %1059 = vmatprep.subr.bf16.mxu0 0
        %1060 = vmatpush1.bf16.msra.mxu0 0
        %1061 = vmatprep.mubr.bf16.mxu0 0
        %1062 = vmatmul.mubr.bf16.gmra.mrb[0].mxu0 %v1018
        %v1063 = vpop.f32.mrb[0].mxu0
        %v1064 = vadd.f32 0.0, %v1063
        %v1065 = vpop.f32.mrb[0].mxu0
        %v1066 = vpop.f32.mrb[0].mxu0
        %v1067 = vadd.f32 0.0, %v1066
        %v1068 = vpop.f32.mrb[0].mxu0
        %1069 = vmatprep.mubr.bf16.mxu0 0
        %1070 = vmatmul.mubr.bf16.gmra.mrb[0].mxu0 %v1021
        %v1071 = vpop.f32.mrb[0].mxu0
        %v1072 = vadd.f32 0.0, %v1071
        %v1073 = vpop.f32.mrb[0].mxu0
        %v1074 = vpop.f32.mrb[0].mxu0
        %v1075 = vadd.f32 0.0, %v1074
        %v1076 = vpop.f32.mrb[0].mxu0
        %1077 = vmatprep.mubr.bf16.mxu0 0
        %1078 = vmatmul.mubr.bf16.gmra.mrb[0].mxu0 %v1024
        %v1079 = vpop.f32.mrb[0].mxu0
        %v1080 = vadd.f32 0.0, %v1079
        %v1081 = vpop.f32.mrb[0].mxu0
        %v1082 = vpop.f32.mrb[0].mxu0
        %v1083 = vadd.f32 0.0, %v1082
        %v1084 = vpop.f32.mrb[0].mxu0
        %1085 = vmatprep.mubr.bf16.mxu0 0
        %1086 = vmatmul.mubr.bf16.gmra.mrb[0].mxu0 %v1027
        %v1087 = vpop.f32.mrb[0].mxu0
        %v1088 = vadd.f32 0.0, %v1087
        %v1089 = vpop.f32.mrb[0].mxu0
        %v1090 = vpop.f32.mrb[0].mxu0
        %v1091 = vadd.f32 0.0, %v1090
        %v1092 = vpop.f32.mrb[0].mxu0
        %1093 = vdwg.mxu0
        %v1094 = vpack.c.bf16 %v1067, %v1064
        %v1095 = vpack.c.bf16 %v1075, %v1072
        %v1096 = vpack.c.bf16 %v1083, %v1080
        %v1097 = vpack.c.bf16 %v1091, %v1088
        %v1098 = vld [vmem:[#allocation10] sm:$0xf]
        %v1099 = vld [vmem:[#allocation10 + $0x4] sm:$0xf]
        %s1100 = sld [smem:[#allocation2]]
        %v1101 = vstv %s1100
        %v1104 = vunpack.c.l.b16 %v1098
        %v1105 = vunpack.c.l.b16 %v1099
        %v1106 = vpack.c.b16 %v1105, %v1104
        %v1109 = vsel %vm1016, %v1094, 0
        %v1112 = vsel %vm1016, %v1095, 0
        %v1115 = vsel %vm1016, %v1096, 0
        %v1118 = vsel %vm1016, %v1097, 0
        %1120 = vmatprep.subr.bf16.mxu0 0
        %1121 = vmatpush1.bf16.msra.mxu0 %v1106
        %1122 = vmatprep.subr.bf16.mxu0 0
        %1123 = vmatpush1.bf16.msra.mxu0 0
        %1124 = vmatprep.subr.bf16.mxu0 0
        %1125 = vmatpush1.bf16.msra.mxu0 0
        %1126 = vmatprep.subr.bf16.mxu0 0
        %1127 = vmatpush1.bf16.msra.mxu0 0
        %1128 = vmatprep.subr.bf16.mxu0 0
        %1129 = vmatpush1.bf16.msra.mxu0 0
        %1130 = vmatprep.subr.bf16.mxu0 0
        %1131 = vmatpush1.bf16.msra.mxu0 0
        %1132 = vmatprep.subr.bf16.mxu0 0
        %1133 = vmatpush1.bf16.msra.mxu0 0
        %1134 = vmatprep.subr.bf16.mxu0 0
        %1135 = vmatpush1.bf16.msra.mxu0 0
        %1136 = vmatprep.subr.bf16.mxu0 0
        %1137 = vmatpush1.bf16.msra.mxu0 0
        %1138 = vmatprep.subr.bf16.mxu0 0
        %1139 = vmatpush1.bf16.msra.mxu0 0
        %1140 = vmatprep.subr.bf16.mxu0 0
        %1141 = vmatpush1.bf16.msra.mxu0 0
        %1142 = vmatprep.subr.bf16.mxu0 0
        %1143 = vmatpush1.bf16.msra.mxu0 0
        %1144 = vmatprep.subr.bf16.mxu0 0
        %1145 = vmatpush1.bf16.msra.mxu0 0
        %1146 = vmatprep.subr.bf16.mxu0 0
        %1147 = vmatpush1.bf16.msra.mxu0 0
        %1148 = vmatprep.subr.bf16.mxu0 0
        %1149 = vmatpush1.bf16.msra.mxu0 0
        %1150 = vmatprep.subr.bf16.mxu0 0
        %1151 = vmatpush1.bf16.msra.mxu0 0
        %1152 = vmatprep.mubr.bf16.mxu0 0
        %1153 = vmatmul.mubr.bf16.gmra.mrb[0].mxu0 %v1109
        %v1154 = vpop.f32.mrb[0].mxu0
        %v1155 = vadd.f32 %v1101, %v1154
        %v1156 = vpop.f32.mrb[0].mxu0
        %v1157 = vpop.f32.mrb[0].mxu0
        %v1158 = vadd.f32 %v1101, %v1157
        %v1159 = vpop.f32.mrb[0].mxu0
        %1160 = vmatprep.mubr.bf16.mxu0 0
        %1161 = vmatmul.mubr.bf16.gmra.mrb[0].mxu0 %v1112
        %v1162 = vpop.f32.mrb[0].mxu0
        %v1163 = vadd.f32 %v1101, %v1162
        %v1164 = vpop.f32.mrb[0].mxu0
        %v1165 = vpop.f32.mrb[0].mxu0
        %v1166 = vadd.f32 %v1101, %v1165
        %v1167 = vpop.f32.mrb[0].mxu0
        %1168 = vmatprep.mubr.bf16.mxu0 0
        %1169 = vmatmul.mubr.bf16.gmra.mrb[0].mxu0 %v1115
        %v1170 = vpop.f32.mrb[0].mxu0
        %v1171 = vadd.f32 %v1101, %v1170
        %v1172 = vpop.f32.mrb[0].mxu0
        %v1173 = vpop.f32.mrb[0].mxu0
        %v1174 = vadd.f32 %v1101, %v1173
        %v1175 = vpop.f32.mrb[0].mxu0
        %1176 = vmatprep.mubr.bf16.mxu0 0
        %1177 = vmatmul.mubr.bf16.gmra.mrb[0].mxu0 %v1118
        %v1178 = vpop.f32.mrb[0].mxu0
        %v1179 = vadd.f32 %v1101, %v1178
        %v1180 = vpop.f32.mrb[0].mxu0
        %v1181 = vpop.f32.mrb[0].mxu0
        %v1182 = vadd.f32 %v1101, %v1181
        %v1183 = vpop.f32.mrb[0].mxu0
        %1184 = vdwg.mxu0
        %vm1185 = vcmask 523264
        %1186 = vst.msk [vmem:[%s284] sm:$0xff] %vm1185, %v1155
        %1187 = vst.msk [vmem:[%s284 + $0x8] sm:$0xff] %vm1185, %v1158
        %1188 = vst.msk [vmem:[%s284 + $0x10] sm:$0xff] %vm1185, %v1163
        %1189 = vst.msk [vmem:[%s284 + $0x18] sm:$0xff] %vm1185, %v1166
        %1190 = vst.msk [vmem:[%s284 + $0x20] sm:$0xff] %vm1185, %v1171
        %1191 = vst.msk [vmem:[%s284 + $0x28] sm:$0xff] %vm1185, %v1174
        %1192 = vst.msk [vmem:[%s284 + $0x30] sm:$0xff] %vm1185, %v1179
        %1193 = vst.msk [vmem:[%s284 + $0x38] sm:$0xff] %vm1185, %v1182
        %s1194 = sand.u32 %s143, 1
        %s1195 = scalar_lea.sflag [#allocation5], %s1194
        %s1196 = sand.u32 %s143, 1
        %s1197 = smul.addr %s1196, 64
        %s1198 = scalar_lea.vmem [#allocation11], %s1197
        // Predicated region
        $region57: #{tpu_custom_call.1} parent=39 // pred_check
          %p1199 = pneg %p153
        $region58: #{tpu_custom_call.1} parent=39 // pred_check_branch
          %1201 = sbr.rel (%p1199) target = $region60
        $region59: #{tpu_custom_call.1} parent=39 // pred_region
          %s1203 = ssub.s32 1024, 1024
          %1204 = vsyncadd %s1195, %s1203
          %s1205 = smul.addr %s25, 8
          %s1206 = smul.addr %s1205, 128
          %s1207 = scalar_lea.hbm %s5, %s1206
          %s1208 = sshll.u32 %s1198, 4
          %s1209 = int_to_ptr.vmem [resolvable:$true] %s1208
          %1214 = dma.vmem_to_hbm [thread:$0]  %s1209, 1024, %s1207, %s1195, 128, 128, 8
        $region60: #{tpu_custom_call.1} parent=39 // pred_fallthru
          _
      $region40: #{tpu_custom_call.1} parent=5 // pred_fallthru
        _
      %p1215 = scmp.le.s32.totalorder 2, %s20
      // Predicated region
      $region61: #{tpu_custom_call.1} parent=5 // pred_check
        %p1216 = pneg %p1215
      $region62: #{tpu_custom_call.1} parent=5 // pred_check_branch
        %1218 = sbr.rel (%p1216) target = $region64
      $region63: #{tpu_custom_call.1} parent=5 // pred_region
        %s1219 = ssub.s32 %s20, 2
        // Predicated region
        $region65: #{tpu_custom_call.1} parent=63 // pred_check
          %p1220 = pneg %p159
        $region66: #{tpu_custom_call.1} parent=63 // pred_check_branch
          %1222 = sbr.rel (%p1220) target = $region68
        $region67: #{tpu_custom_call.1} parent=63 // pred_region
          %s1223 = sand.u32 %s144, 1
          %s1224 = scalar_lea.sflag [#allocation5], %s1223
          %s1225 = sand.u32 %s144, 1
          %s1226 = smul.addr %s1225, 64
          %s1227 = scalar_lea.vmem [#allocation11], %s1226
          %1228 = dma.done %s1224, 1024
        $region68: #{tpu_custom_call.1} parent=63 // pred_fallthru
          _
      $region64: #{tpu_custom_call.1} parent=5 // pred_fallthru
        _
    $region6: #{tpu_custom_call.1} parent=1 // loop_footer
      %s24 = sadd.s32 1, %s20
    $region7: #{tpu_custom_call.1} parent=1 // loop_footer_branch
      %19 = sbr.rel target = $region3
    $region8: #{tpu_custom_call.1} parent=1 // loop_exit
      _
    %1229 = vsyncpa [#allocation4], 1
    %s1230 = scalar_lea.sflag [#allocation4], 1
    %1231 = vsyncpa %s1230, 1
    %1232 = vsyncpa [#allocation9], 1
    %1233 = vsyncpa [#allocation5], 1
    %s1234 = scalar_lea.sflag [#allocation5], 1
    %1235 = vsyncpa %s1234, 1
    %1236 = vsyncpa [#allocation6], 1
    %s1237 = scalar_lea.sflag [#allocation6], 1
    %1238 = vsyncpa %s1237, 1

</llo_original>
